<compile_context>
chip_gen: v7x
topology: tpu7x:2x2x1
jax: 0.10.0
libtpu: 0.0.40
codegen_flags: <defaults>
</compile_context>

<pallas_src>
import math

import jax
import jax.numpy as jnp
from jax.experimental import pallas as pl
from jax.experimental.pallas import tpu as pltpu


def _round_up(v: int, m: int) -> int:
    return ((v + m - 1) // m) * m


def rnn_block_kernel(x_ref, h0_ref, wx_ref, wh_ref, b_ref, out_ref, h_scr):
    """One grid step == `block_t` RNN timesteps for one batch tile.

    x_ref  : (block_n, block_t, D)   raw inputs for this (batch, time) tile
    h0_ref : (block_n, Hp)           initial hidden state for this batch tile
    wx_ref : (D, Hp)                 input->hidden weights (grid-resident)
    wh_ref : (Hp, Hp)                hidden->hidden weights (grid-resident)
    b_ref  : (1, Hp) f32             bias
    out_ref: (block_n, block_t, Hp)  hidden states, already in (N, T, H) layout
    h_scr  : (block_n, Hp) f32       recurrent carry across time blocks
    """
    t_blk = pl.program_id(1)

    @pl.when(t_blk == 0)
    def _():
        # New batch tile: (re)load the initial hidden state for this shard.
        h_scr[...] = h0_ref[...].astype(jnp.float32)

    wx = wx_ref[...]
    wh = wh_ref[...]
    bias = b_ref[...].astype(jnp.float32)        # (1, Hp), broadcasts over rows
    block_t = x_ref.shape[1]

    h = h_scr[...]                               # f32 carry, stays in vregs
    # Static unroll: j is a compile-time constant so the x slice and the
    # output store are plain static accesses (Hp stays lane-dense), and the
    # projection matmul (independent of h) can be scheduled off the serial
    # h -> h@Wh -> tanh critical path.
    for j in range(block_t):
        xj = x_ref[:, j, :]                                        # (block_n, D)
        zj = jnp.dot(xj, wx, preferred_element_type=jnp.float32) + bias
        a = jnp.dot(h.astype(wh.dtype), wh,
                    preferred_element_type=jnp.float32)            # bf16/f32 MXU, f32 acc
        h = jnp.tanh(a + zj)                                       # f32 EUP tanh
        out_ref[:, j, :] = h.astype(out_ref.dtype)
    h_scr[...] = h


def rnn_forward_pallas(x, h0, Wx, Wh, b, *, block_t=8, block_n=None,
                       mxu_dtype=jnp.bfloat16):
    """Full-sequence RNN forward.  x: (N, T, D), h0: (N, H) -> (N, T, H).

    mxu_dtype: dtype of the MXU matmul operands (default bf16, f32 accumulate,
               f32 carry/tanh).  Pass jnp.float32 for bit-tight accuracy.
    """
    N, T, D = x.shape
    H = Wh.shape[0]
    out_dtype = x.dtype
    f32 = jnp.float32
    mxu_dtype = f32 if mxu_dtype is None else mxu_dtype

    # ---- tile / padding choices -------------------------------------------
    block_t = max(8, _round_up(max(block_t, 1), 8))        # (8,128) constraint
    block_t = min(block_t, _round_up(max(T, 1), 8))
    Tp = _round_up(max(T, 1), block_t)

    Hp = _round_up(max(H, 1), 128)
    Np0 = _round_up(max(N, 1), 8)
    if block_n is None:
        # <= 256 rows (MXU-friendly on all gens) and >= 2 batch blocks when
        # N >= 16 so the "parallel" batch axis can be core-sharded.
        block_n = min(256, max(8, _round_up((Np0 + 1) // 2, 8)))
    block_n = min(_round_up(block_n, 8), Np0)
    Np = _round_up(Np0, block_n)

    # ---- operand prep (single small pass each; no z materialization) -------
    x_p = jnp.pad(x.astype(mxu_dtype), ((0, Np - N), (0, Tp - T), (0, 0)))
    h0_p = jnp.pad(h0.astype(f32), ((0, Np - N), (0, Hp - H)))
    wx_p = jnp.pad(Wx.astype(f32), ((0, 0), (0, Hp - H))).astype(mxu_dtype)
    wh_p = jnp.pad(Wh.astype(f32), ((0, Hp - H), (0, Hp - H))).astype(mxu_dtype)
    b_p = jnp.pad(b.astype(f32), (0, Hp - H)).reshape(1, Hp)

    grid = (Np // block_n, Tp // block_t)

    # ---- explicit VMEM budget (double-buffered blocks + residents) ---------
    wb = jnp.dtype(mxu_dtype).itemsize
    xb = jnp.dtype(x_p.dtype).itemsize
    ob = jnp.dtype(out_dtype).itemsize
    vmem_est = (2 * block_n * block_t * D * xb        # x tile, double-buffered
                + 2 * block_n * block_t * Hp * ob     # out tile, double-buffered
                + 2 * block_n * Hp * 4                # h0 tile
                + 2 * D * Hp * wb                     # Wx (constant index map)
                + 2 * Hp * Hp * wb                    # Wh (constant index map)
                + 2 * Hp * 4                          # bias
                + block_n * Hp * 4)                   # h_scr scratch
    vmem_limit = int(min(64 * 1024 * 1024,
                         max(int(1.25 * vmem_est) + (4 << 20), 16 << 20)))

    out_pad = pl.pallas_call(
        rnn_block_kernel,
        out_shape=jax.ShapeDtypeStruct((Np, Tp, Hp), out_dtype),
        grid_spec=pltpu.PrefetchScalarGridSpec(
            num_scalar_prefetch=0,
            grid=grid,
            in_specs=[
                # x: per (batch block, time block) slab, native (N, T, D) layout
                pl.BlockSpec((block_n, block_t, D), lambda nb, tb: (nb, tb, 0)),
                # h0: per batch block, constant over time
                pl.BlockSpec((block_n, Hp), lambda nb, tb: (nb, 0)),
                # Wx, Wh, b: grid-resident
                pl.BlockSpec((D, Hp), lambda nb, tb: (0, 0)),
                pl.BlockSpec((Hp, Hp), lambda nb, tb: (0, 0)),
                pl.BlockSpec((1, Hp), lambda nb, tb: (0, 0)),
            ],
            # Output already in (N, T, H) layout -> no post-kernel transpose.
            out_specs=pl.BlockSpec((block_n, block_t, Hp),
                                   lambda nb, tb: (nb, tb, 0)),
            scratch_shapes=[pltpu.VMEM((block_n, Hp), jnp.float32)],
        ),
        compiler_params=pltpu.CompilerParams(
            # Batch blocks are independent (megacore-shardable); the time axis
            # carries the recurrence through h_scr and must iterate innermost
            # (grid is row-major, last axis fastest) -> "arbitrary".
            dimension_semantics=("parallel", "arbitrary"),
            vmem_limit_bytes=vmem_limit,
        ),
    )(x_p, h0_p, wx_p, wh_p, b_p)

    # Strip padding; layout is already the PyTorch (N, T, H).
    return out_pad[:N, :T, :H]


def rnn_forward_ref(x, h0, Wx, Wh, b, matmul_dtype=jnp.float32):
    """Plain-JAX reference.  matmul_dtype=f32 mirrors PyTorch rnn_forward
    exactly; matmul_dtype=bf16 mirrors the kernel's bf16-operand / f32-accum
    numerics for validating the default MXU path."""
    f32 = jnp.float32
    md = matmul_dtype
    x_md, wx_md, wh_md = x.astype(md), Wx.astype(md), Wh.astype(md)
    b_f32 = b.astype(f32)
    h = h0.astype(f32)
    outs = []
    for t in range(x.shape[1]):
        z = jnp.dot(x_md[:, t, :], wx_md, preferred_element_type=f32) + b_f32
        a = jnp.dot(h.astype(md), wh_md, preferred_element_type=f32)
        h = jnp.tanh(a + z)
        outs.append(h)
    return jnp.stack(outs, axis=1)


if __name__ == "__main__":
    # Small shapes consistent with the module forward: x (N, T, D), h0 (N, H).
    N, T, D, H = 2, 8, 16, 32

    key = jax.random.PRNGKey(0)
    k_wx, k_wh, k_x, k_h0 = jax.random.split(key, 4)

    # Deterministic parameter init matching RNN.__init__:
    #   Wx ~ randn(D, H) / sqrt(D), Wh ~ randn(H, H) / sqrt(H), b = zeros(H)
    Wx = jax.random.normal(k_wx, (D, H), dtype=jnp.float32) / math.sqrt(D)
    Wh = jax.random.normal(k_wh, (H, H), dtype=jnp.float32) / math.sqrt(H)
    b = jnp.zeros((H,), dtype=jnp.float32)

    x = jax.random.normal(k_x, (N, T, D), dtype=jnp.float32)
    h0 = jax.random.normal(k_h0, (N, H), dtype=jnp.float32)

    ref_f32 = rnn_forward_ref(x, h0, Wx, Wh, b)                       # spec semantics
    ref_bf16 = rnn_forward_ref(x, h0, Wx, Wh, b, jnp.bfloat16)        # mirrors bf16 path

    # Default path: bf16 MXU operands, f32 accumulate / carry / tanh.
    out_bf16 = jax.block_until_ready(rnn_forward_pallas(x, h0, Wx, Wh, b))
    assert out_bf16.shape == (N, T, H)
    err_vs_bf16ref = float(jnp.max(jnp.abs(out_bf16 - ref_bf16)))
    assert err_vs_bf16ref < 5e-3, err_vs_bf16ref
    # bf16 rounding compounds over T steps; loose bound vs the exact-f32 spec.
    err_vs_f32ref = float(jnp.max(jnp.abs(out_bf16 - ref_f32)))
    assert err_vs_f32ref < 1.5e-1, err_vs_f32ref

    # Bit-tight f32 path against the PyTorch-semantics reference.
    out_f32 = jax.block_until_ready(
        rnn_forward_pallas(x, h0, Wx, Wh, b, mxu_dtype=jnp.float32))
    err_f32 = float(jnp.max(jnp.abs(out_f32 - ref_f32)))
    assert err_f32 < 1e-4, err_f32

    print("KERNEL_OK")
</pallas_src>

<mosaic_0001>
module attributes {stable_mosaic.version = 11 : i64} {
  func.func @rnn_block_kernel(%arg0: i32, %arg1: i32, %arg2: memref<8x8x16xbf16, #tpu.memory_space<vmem>>, %arg3: memref<8x128xf32, #tpu.memory_space<vmem>>, %arg4: memref<16x128xbf16, #tpu.memory_space<vmem>>, %arg5: memref<128x128xbf16, #tpu.memory_space<vmem>>, %arg6: memref<1x128xf32, #tpu.memory_space<vmem>>, %arg7: memref<8x8x128xf32, #tpu.memory_space<vmem>>, %arg8: memref<8x128xf32, #tpu.memory_space<vmem>>) attributes {dimension_semantics = [#tpu.dimension_semantics<parallel>, #tpu.dimension_semantics<arbitrary>], iteration_bounds = array<i64: 1, 1>, scalar_prefetch = 0 : i64, scratch_operands = 1 : i64, tpu.core_type = #tpu.core_type<tc>, window_params = [{transform_indices = @transform_0, window_bounds = array<i64: 8, 8, 16>}, {transform_indices = @transform_1, window_bounds = array<i64: 8, 128>}, {pipeline_mode = #tpu.pipeline_mode<synchronous>, transform_indices = @transform_2, window_bounds = array<i64: 16, 128>}, {pipeline_mode = #tpu.pipeline_mode<synchronous>, transform_indices = @transform_3, window_bounds = array<i64: 128, 128>}, {pipeline_mode = #tpu.pipeline_mode<synchronous>, transform_indices = @transform_4, window_bounds = array<i64: 1, 128>}, {transform_indices = @transform_5, window_bounds = array<i64: 8, 8, 128>}]} {
    %c0_i32 = arith.constant 0 : i32
    %0 = arith.cmpi eq, %arg1, %c0_i32 : i32
    %1 = arith.extui %0 : i1 to i32
    %c0_i32_0 = arith.constant 0 : i32
    %2 = arith.cmpi ne, %1, %c0_i32_0 : i32
    scf.if %2 {
      %c0_66 = arith.constant 0 : index
      %c0_67 = arith.constant 0 : index
      %104 = vector.load %arg3[%c0_66, %c0_67] : memref<8x128xf32, #tpu.memory_space<vmem>>, vector<8x128xf32>
      %c0_68 = arith.constant 0 : index
      %c0_69 = arith.constant 0 : index
      %105 = vector.load %arg8[%c0_68, %c0_69] : memref<8x128xf32, #tpu.memory_space<vmem>>, vector<8x128xf32>
      tpu.vector_store %arg8[%c0_68, %c0_69], %104 {strides = array<i32>} : memref<8x128xf32, #tpu.memory_space<vmem>>, vector<8x128xf32>,
    } else {
    }
    %c0 = arith.constant 0 : index
    %c0_1 = arith.constant 0 : index
    %3 = vector.load %arg4[%c0, %c0_1] : memref<16x128xbf16, #tpu.memory_space<vmem>>, vector<16x128xbf16>
    %c0_2 = arith.constant 0 : index
    %c0_3 = arith.constant 0 : index
    %4 = vector.load %arg5[%c0_2, %c0_3] : memref<128x128xbf16, #tpu.memory_space<vmem>>, vector<128x128xbf16>
    %c0_4 = arith.constant 0 : index
    %c0_5 = arith.constant 0 : index
    %5 = vector.load %arg6[%c0_4, %c0_5] : memref<1x128xf32, #tpu.memory_space<vmem>>, vector<1x128xf32>
    %c0_6 = arith.constant 0 : index
    %c0_7 = arith.constant 0 : index
    %6 = vector.load %arg8[%c0_6, %c0_7] : memref<8x128xf32, #tpu.memory_space<vmem>>, vector<8x128xf32>
    %c0_8 = arith.constant 0 : index
    %c0_9 = arith.constant 0 : index
    %c0_10 = arith.constant 0 : index
    %7 = vector.load %arg2[%c0_8, %c0_9, %c0_10] : memref<8x8x16xbf16, #tpu.memory_space<vmem>>, vector<8x1x16xbf16>
    %8 = vector.shape_cast %7 : vector<8x1x16xbf16> to vector<8x16xbf16>
    %cst = arith.constant dense<0.000000e+00> : vector<8x128xf32>
    %9 = tpu.matmul %8, %3, %cst {dimension_numbers = #tpu.dot_dimension_numbers<[1], [0], [0], [1], [0, 0, 1, 1], [], []>} : vector<8x16xbf16>, vector<16x128xbf16>, vector<8x128xf32> -> vector<8x128xf32>
    %10 = vector.broadcast %5 : vector<1x128xf32> to vector<8x128xf32>
    %11 = arith.addf %9, %10 : vector<8x128xf32>
    %12 = arith.truncf %6 : vector<8x128xf32> to vector<8x128xbf16>
    %cst_11 = arith.constant dense<0.000000e+00> : vector<8x128xf32>
    %13 = tpu.matmul %12, %4, %cst_11 {dimension_numbers = #tpu.dot_dimension_numbers<[1], [0], [0], [1], [0, 0, 1, 1], [], []>} : vector<8x128xbf16>, vector<128x128xbf16>, vector<8x128xf32> -> vector<8x128xf32>
    %14 = arith.addf %13, %11 : vector<8x128xf32>
    %15 = math.tanh %14 : vector<8x128xf32>
    %c0_12 = arith.constant 0 : index
    %c0_13 = arith.constant 0 : index
    %c0_14 = arith.constant 0 : index
    %16 = vector.load %arg7[%c0_12, %c0_13, %c0_14] : memref<8x8x128xf32, #tpu.memory_space<vmem>>, vector<8x1x128xf32>
    %17 = vector.shape_cast %16 : vector<8x1x128xf32> to vector<8x128xf32>
    %18 = vector.shape_cast %15 : vector<8x128xf32> to vector<8x1x128xf32>
    tpu.vector_store %arg7[%c0_12, %c0_13, %c0_14], %18 {strides = array<i32>} : memref<8x8x128xf32, #tpu.memory_space<vmem>>, vector<8x1x128xf32>,
    %c0_15 = arith.constant 0 : index
    %c1 = arith.constant 1 : index
    %c0_16 = arith.constant 0 : index
    %19 = vector.load %arg2[%c0_15, %c1, %c0_16] : memref<8x8x16xbf16, #tpu.memory_space<vmem>>, vector<8x1x16xbf16>
    %20 = vector.shape_cast %19 : vector<8x1x16xbf16> to vector<8x16xbf16>
    %cst_17 = arith.constant dense<0.000000e+00> : vector<8x128xf32>
    %21 = tpu.matmul %20, %3, %cst_17 {dimension_numbers = #tpu.dot_dimension_numbers<[1], [0], [0], [1], [0, 0, 1, 1], [], []>} : vector<8x16xbf16>, vector<16x128xbf16>, vector<8x128xf32> -> vector<8x128xf32>
    %22 = vector.broadcast %5 : vector<1x128xf32> to vector<8x128xf32>
    %23 = arith.addf %21, %22 : vector<8x128xf32>
    %24 = arith.truncf %15 : vector<8x128xf32> to vector<8x128xbf16>
    %cst_18 = arith.constant dense<0.000000e+00> : vector<8x128xf32>
    %25 = tpu.matmul %24, %4, %cst_18 {dimension_numbers = #tpu.dot_dimension_numbers<[1], [0], [0], [1], [0, 0, 1, 1], [], []>} : vector<8x128xbf16>, vector<128x128xbf16>, vector<8x128xf32> -> vector<8x128xf32>
    %26 = arith.addf %25, %23 : vector<8x128xf32>
    %27 = math.tanh %26 : vector<8x128xf32>
    %c0_19 = arith.constant 0 : index
    %c1_20 = arith.constant 1 : index
    %c0_21 = arith.constant 0 : index
    %28 = vector.load %arg7[%c0_19, %c1_20, %c0_21] : memref<8x8x128xf32, #tpu.memory_space<vmem>>, vector<8x1x128xf32>
    %29 = vector.shape_cast %28 : vector<8x1x128xf32> to vector<8x128xf32>
    %30 = vector.shape_cast %27 : vector<8x128xf32> to vector<8x1x128xf32>
    tpu.vector_store %arg7[%c0_19, %c1_20, %c0_21], %30 {strides = array<i32>} : memref<8x8x128xf32, #tpu.memory_space<vmem>>, vector<8x1x128xf32>,
    %c0_22 = arith.constant 0 : index
    %c2 = arith.constant 2 : index
    %c0_23 = arith.constant 0 : index
    %31 = vector.load %arg2[%c0_22, %c2, %c0_23] : memref<8x8x16xbf16, #tpu.memory_space<vmem>>, vector<8x1x16xbf16>
    %32 = vector.shape_cast %31 : vector<8x1x16xbf16> to vector<8x16xbf16>
    %cst_24 = arith.constant dense<0.000000e+00> : vector<8x128xf32>
    %33 = tpu.matmul %32, %3, %cst_24 {dimension_numbers = #tpu.dot_dimension_numbers<[1], [0], [0], [1], [0, 0, 1, 1], [], []>} : vector<8x16xbf16>, vector<16x128xbf16>, vector<8x128xf32> -> vector<8x128xf32>
    %34 = vector.broadcast %5 : vector<1x128xf32> to vector<8x128xf32>
    %35 = arith.addf %33, %34 : vector<8x128xf32>
    %36 = arith.truncf %27 : vector<8x128xf32> to vector<8x128xbf16>
    %cst_25 = arith.constant dense<0.000000e+00> : vector<8x128xf32>
    %37 = tpu.matmul %36, %4, %cst_25 {dimension_numbers = #tpu.dot_dimension_numbers<[1], [0], [0], [1], [0, 0, 1, 1], [], []>} : vector<8x128xbf16>, vector<128x128xbf16>, vector<8x128xf32> -> vector<8x128xf32>
    %38 = arith.addf %37, %35 : vector<8x128xf32>
    %39 = math.tanh %38 : vector<8x128xf32>
    %c0_26 = arith.constant 0 : index
    %c2_27 = arith.constant 2 : index
    %c0_28 = arith.constant 0 : index
    %40 = vector.load %arg7[%c0_26, %c2_27, %c0_28] : memref<8x8x128xf32, #tpu.memory_space<vmem>>, vector<8x1x128xf32>
    %41 = vector.shape_cast %40 : vector<8x1x128xf32> to vector<8x128xf32>
    %42 = vector.shape_cast %39 : vector<8x128xf32> to vector<8x1x128xf32>
    tpu.vector_store %arg7[%c0_26, %c2_27, %c0_28], %42 {strides = array<i32>} : memref<8x8x128xf32, #tpu.memory_space<vmem>>, vector<8x1x128xf32>,
    %c0_29 = arith.constant 0 : index
    %c3 = arith.constant 3 : index
    %c0_30 = arith.constant 0 : index
    %43 = vector.load %arg2[%c0_29, %c3, %c0_30] : memref<8x8x16xbf16, #tpu.memory_space<vmem>>, vector<8x1x16xbf16>
    %44 = vector.shape_cast %43 : vector<8x1x16xbf16> to vector<8x16xbf16>
    %cst_31 = arith.constant dense<0.000000e+00> : vector<8x128xf32>
    %45 = tpu.matmul %44, %3, %cst_31 {dimension_numbers = #tpu.dot_dimension_numbers<[1], [0], [0], [1], [0, 0, 1, 1], [], []>} : vector<8x16xbf16>, vector<16x128xbf16>, vector<8x128xf32> -> vector<8x128xf32>
    %46 = vector.broadcast %5 : vector<1x128xf32> to vector<8x128xf32>
    %47 = arith.addf %45, %46 : vector<8x128xf32>
    %48 = arith.truncf %39 : vector<8x128xf32> to vector<8x128xbf16>
    %cst_32 = arith.constant dense<0.000000e+00> : vector<8x128xf32>
    %49 = tpu.matmul %48, %4, %cst_32 {dimension_numbers = #tpu.dot_dimension_numbers<[1], [0], [0], [1], [0, 0, 1, 1], [], []>} : vector<8x128xbf16>, vector<128x128xbf16>, vector<8x128xf32> -> vector<8x128xf32>
    %50 = arith.addf %49, %47 : vector<8x128xf32>
    %51 = math.tanh %50 : vector<8x128xf32>
    %c0_33 = arith.constant 0 : index
    %c3_34 = arith.constant 3 : index
    %c0_35 = arith.constant 0 : index
    %52 = vector.load %arg7[%c0_33, %c3_34, %c0_35] : memref<8x8x128xf32, #tpu.memory_space<vmem>>, vector<8x1x128xf32>
    %53 = vector.shape_cast %52 : vector<8x1x128xf32> to vector<8x128xf32>
    %54 = vector.shape_cast %51 : vector<8x128xf32> to vector<8x1x128xf32>
    tpu.vector_store %arg7[%c0_33, %c3_34, %c0_35], %54 {strides = array<i32>} : memref<8x8x128xf32, #tpu.memory_space<vmem>>, vector<8x1x128xf32>,
    %c0_36 = arith.constant 0 : index
    %c4 = arith.constant 4 : index
    %c0_37 = arith.constant 0 : index
    %55 = vector.load %arg2[%c0_36, %c4, %c0_37] : memref<8x8x16xbf16, #tpu.memory_space<vmem>>, vector<8x1x16xbf16>
    %56 = vector.shape_cast %55 : vector<8x1x16xbf16> to vector<8x16xbf16>
    %cst_38 = arith.constant dense<0.000000e+00> : vector<8x128xf32>
    %57 = tpu.matmul %56, %3, %cst_38 {dimension_numbers = #tpu.dot_dimension_numbers<[1], [0], [0], [1], [0, 0, 1, 1], [], []>} : vector<8x16xbf16>, vector<16x128xbf16>, vector<8x128xf32> -> vector<8x128xf32>
    %58 = vector.broadcast %5 : vector<1x128xf32> to vector<8x128xf32>
    %59 = arith.addf %57, %58 : vector<8x128xf32>
    %60 = arith.truncf %51 : vector<8x128xf32> to vector<8x128xbf16>
    %cst_39 = arith.constant dense<0.000000e+00> : vector<8x128xf32>
    %61 = tpu.matmul %60, %4, %cst_39 {dimension_numbers = #tpu.dot_dimension_numbers<[1], [0], [0], [1], [0, 0, 1, 1], [], []>} : vector<8x128xbf16>, vector<128x128xbf16>, vector<8x128xf32> -> vector<8x128xf32>
    %62 = arith.addf %61, %59 : vector<8x128xf32>
    %63 = math.tanh %62 : vector<8x128xf32>
    %c0_40 = arith.constant 0 : index
    %c4_41 = arith.constant 4 : index
    %c0_42 = arith.constant 0 : index
    %64 = vector.load %arg7[%c0_40, %c4_41, %c0_42] : memref<8x8x128xf32, #tpu.memory_space<vmem>>, vector<8x1x128xf32>
    %65 = vector.shape_cast %64 : vector<8x1x128xf32> to vector<8x128xf32>
    %66 = vector.shape_cast %63 : vector<8x128xf32> to vector<8x1x128xf32>
    tpu.vector_store %arg7[%c0_40, %c4_41, %c0_42], %66 {strides = array<i32>} : memref<8x8x128xf32, #tpu.memory_space<vmem>>, vector<8x1x128xf32>,
    %c0_43 = arith.constant 0 : index
    %c5 = arith.constant 5 : index
    %c0_44 = arith.constant 0 : index
    %67 = vector.load %arg2[%c0_43, %c5, %c0_44] : memref<8x8x16xbf16, #tpu.memory_space<vmem>>, vector<8x1x16xbf16>
    %68 = vector.shape_cast %67 : vector<8x1x16xbf16> to vector<8x16xbf16>
    %cst_45 = arith.constant dense<0.000000e+00> : vector<8x128xf32>
    %69 = tpu.matmul %68, %3, %cst_45 {dimension_numbers = #tpu.dot_dimension_numbers<[1], [0], [0], [1], [0, 0, 1, 1], [], []>} : vector<8x16xbf16>, vector<16x128xbf16>, vector<8x128xf32> -> vector<8x128xf32>
    %70 = vector.broadcast %5 : vector<1x128xf32> to vector<8x128xf32>
    %71 = arith.addf %69, %70 : vector<8x128xf32>
    %72 = arith.truncf %63 : vector<8x128xf32> to vector<8x128xbf16>
    %cst_46 = arith.constant dense<0.000000e+00> : vector<8x128xf32>
    %73 = tpu.matmul %72, %4, %cst_46 {dimension_numbers = #tpu.dot_dimension_numbers<[1], [0], [0], [1], [0, 0, 1, 1], [], []>} : vector<8x128xbf16>, vector<128x128xbf16>, vector<8x128xf32> -> vector<8x128xf32>
    %74 = arith.addf %73, %71 : vector<8x128xf32>
    %75 = math.tanh %74 : vector<8x128xf32>
    %c0_47 = arith.constant 0 : index
    %c5_48 = arith.constant 5 : index
    %c0_49 = arith.constant 0 : index
    %76 = vector.load %arg7[%c0_47, %c5_48, %c0_49] : memref<8x8x128xf32, #tpu.memory_space<vmem>>, vector<8x1x128xf32>
    %77 = vector.shape_cast %76 : vector<8x1x128xf32> to vector<8x128xf32>
    %78 = vector.shape_cast %75 : vector<8x128xf32> to vector<8x1x128xf32>
    tpu.vector_store %arg7[%c0_47, %c5_48, %c0_49], %78 {strides = array<i32>} : memref<8x8x128xf32, #tpu.memory_space<vmem>>, vector<8x1x128xf32>,
    %c0_50 = arith.constant 0 : index
    %c6 = arith.constant 6 : index
    %c0_51 = arith.constant 0 : index
    %79 = vector.load %arg2[%c0_50, %c6, %c0_51] : memref<8x8x16xbf16, #tpu.memory_space<vmem>>, vector<8x1x16xbf16>
    %80 = vector.shape_cast %79 : vector<8x1x16xbf16> to vector<8x16xbf16>
    %cst_52 = arith.constant dense<0.000000e+00> : vector<8x128xf32>
    %81 = tpu.matmul %80, %3, %cst_52 {dimension_numbers = #tpu.dot_dimension_numbers<[1], [0], [0], [1], [0, 0, 1, 1], [], []>} : vector<8x16xbf16>, vector<16x128xbf16>, vector<8x128xf32> -> vector<8x128xf32>
    %82 = vector.broadcast %5 : vector<1x128xf32> to vector<8x128xf32>
    %83 = arith.addf %81, %82 : vector<8x128xf32>
    %84 = arith.truncf %75 : vector<8x128xf32> to vector<8x128xbf16>
    %cst_53 = arith.constant dense<0.000000e+00> : vector<8x128xf32>
    %85 = tpu.matmul %84, %4, %cst_53 {dimension_numbers = #tpu.dot_dimension_numbers<[1], [0], [0], [1], [0, 0, 1, 1], [], []>} : vector<8x128xbf16>, vector<128x128xbf16>, vector<8x128xf32> -> vector<8x128xf32>
    %86 = arith.addf %85, %83 : vector<8x128xf32>
    %87 = math.tanh %86 : vector<8x128xf32>
    %c0_54 = arith.constant 0 : index
    %c6_55 = arith.constant 6 : index
    %c0_56 = arith.constant 0 : index
    %88 = vector.load %arg7[%c0_54, %c6_55, %c0_56] : memref<8x8x128xf32, #tpu.memory_space<vmem>>, vector<8x1x128xf32>
    %89 = vector.shape_cast %88 : vector<8x1x128xf32> to vector<8x128xf32>
    %90 = vector.shape_cast %87 : vector<8x128xf32> to vector<8x1x128xf32>
    tpu.vector_store %arg7[%c0_54, %c6_55, %c0_56], %90 {strides = array<i32>} : memref<8x8x128xf32, #tpu.memory_space<vmem>>, vector<8x1x128xf32>,
    %c0_57 = arith.constant 0 : index
    %c7 = arith.constant 7 : index
    %c0_58 = arith.constant 0 : index
    %91 = vector.load %arg2[%c0_57, %c7, %c0_58] : memref<8x8x16xbf16, #tpu.memory_space<vmem>>, vector<8x1x16xbf16>
    %92 = vector.shape_cast %91 : vector<8x1x16xbf16> to vector<8x16xbf16>
    %cst_59 = arith.constant dense<0.000000e+00> : vector<8x128xf32>
    %93 = tpu.matmul %92, %3, %cst_59 {dimension_numbers = #tpu.dot_dimension_numbers<[1], [0], [0], [1], [0, 0, 1, 1], [], []>} : vector<8x16xbf16>, vector<16x128xbf16>, vector<8x128xf32> -> vector<8x128xf32>
    %94 = vector.broadcast %5 : vector<1x128xf32> to vector<8x128xf32>
    %95 = arith.addf %93, %94 : vector<8x128xf32>
    %96 = arith.truncf %87 : vector<8x128xf32> to vector<8x128xbf16>
    %cst_60 = arith.constant dense<0.000000e+00> : vector<8x128xf32>
    %97 = tpu.matmul %96, %4, %cst_60 {dimension_numbers = #tpu.dot_dimension_numbers<[1], [0], [0], [1], [0, 0, 1, 1], [], []>} : vector<8x128xbf16>, vector<128x128xbf16>, vector<8x128xf32> -> vector<8x128xf32>
    %98 = arith.addf %97, %95 : vector<8x128xf32>
    %99 = math.tanh %98 : vector<8x128xf32>
    %c0_61 = arith.constant 0 : index
    %c7_62 = arith.constant 7 : index
    %c0_63 = arith.constant 0 : index
    %100 = vector.load %arg7[%c0_61, %c7_62, %c0_63] : memref<8x8x128xf32, #tpu.memory_space<vmem>>, vector<8x1x128xf32>
    %101 = vector.shape_cast %100 : vector<8x1x128xf32> to vector<8x128xf32>
    %102 = vector.shape_cast %99 : vector<8x128xf32> to vector<8x1x128xf32>
    tpu.vector_store %arg7[%c0_61, %c7_62, %c0_63], %102 {strides = array<i32>} : memref<8x8x128xf32, #tpu.memory_space<vmem>>, vector<8x1x128xf32>,
    %c0_64 = arith.constant 0 : index
    %c0_65 = arith.constant 0 : index
    %103 = vector.load %arg8[%c0_64, %c0_65] : memref<8x128xf32, #tpu.memory_space<vmem>>, vector<8x128xf32>
    tpu.vector_store %arg8[%c0_64, %c0_65], %99 {strides = array<i32>} : memref<8x128xf32, #tpu.memory_space<vmem>>, vector<8x128xf32>,
    return
  }
  func.func @transform_0(%arg0: i32, %arg1: i32) -> (i32, i32, i32) {
    %c0_i32 = arith.constant 0 : i32
    %c0_i32_0 = arith.constant 0 : i32
    return %arg0, %arg1, %c0_i32 : i32, i32, i32
  }
  func.func @transform_1(%arg0: i32, %arg1: i32) -> (i32, i32) {
    %c0_i32 = arith.constant 0 : i32
    %c0_i32_0 = arith.constant 0 : i32
    return %arg0, %c0_i32 : i32, i32
  }
  func.func @transform_2(%arg0: i32, %arg1: i32) -> (i32, i32) {
    %c0_i32 = arith.constant 0 : i32
    %c0_i32_0 = arith.constant 0 : i32
    %c0_i32_1 = arith.constant 0 : i32
    return %c0_i32, %c0_i32_0 : i32, i32
  }
  func.func @transform_3(%arg0: i32, %arg1: i32) -> (i32, i32) {
    %c0_i32 = arith.constant 0 : i32
    %c0_i32_0 = arith.constant 0 : i32
    %c0_i32_1 = arith.constant 0 : i32
    return %c0_i32, %c0_i32_0 : i32, i32
  }
  func.func @transform_4(%arg0: i32, %arg1: i32) -> (i32, i32) {
    %c0_i32 = arith.constant 0 : i32
    %c0_i32_0 = arith.constant 0 : i32
    %c0_i32_1 = arith.constant 0 : i32
    return %c0_i32, %c0_i32_0 : i32, i32
  }
  func.func @transform_5(%arg0: i32, %arg1: i32) -> (i32, i32, i32) {
    %c0_i32 = arith.constant 0 : i32
    %c0_i32_0 = arith.constant 0 : i32
    return %arg0, %arg1, %c0_i32 : i32, i32, i32
  }
}

</mosaic_0001>

<llo_original>
// kernel: tpu_custom_call.1
$region0: #{tpu_custom_call.1}
  #allocation0 [shape = 'u32[]', space=smem, size = 0x4, offset = 0x4, fixed_abs, tag = 'smem constant byte address 0x4 - core index']
  #allocation1 [shape = 'u32[144,128]{1,0:T(1,128)}', space=vmem, size = 0x12000, scoped, tag = 'internal scratch']
  #allocation2 [shape = 'f32[8,128]{1,0:T(8,128)}', space=vmem, size = 0x1000, scoped, tag = 'scratch operand']
  %s0 = inlined_call_operand.hbm [shape: bf16[8,8,16], index: 0, kind: input, shape index: {}]
  %s1 = inlined_call_operand.hbm [shape: f32[8,128], index: 1, kind: input, shape index: {}]
  %s2 = inlined_call_operand.hbm [shape: bf16[16,128], index: 2, kind: input, shape index: {}]
  %s3 = inlined_call_operand.hbm [shape: bf16[128,128], index: 3, kind: input, shape index: {}]
  %s4 = inlined_call_operand.vmem [shape: f32[1,128], index: 4, kind: input, shape index: {}]
  %s5 = inlined_call_operand.hbm [shape: f32[8,8,128], index: 5, kind: output, shape index: {}]
  %s6 = sld [smem:[#allocation0]]
  $region50: #{tpu_custom_call.1} parent=0
    _
  %s8 = ssub.s32 1, %s6
  %s9 = scalar_select 0, %s8, %s6
  $region1: #{tpu_custom_call.1} parent=0
    #allocation3 [shape = 'u8[16384]{0}', space=vmem, size = 0x4000, scoped, tag = 'input window, operand 0, single buffered']
    #allocation4 [shape = 's32[1]{0}', space=sflag, size = 0x4, scoped, tag = 'scoped memory for tpu_custom_call.1']
    #allocation5 [shape = 's32[1]{0}', space=sflag, size = 0x4, scoped, tag = 'scoped memory for tpu_custom_call.1']
    #allocation6 [shape = 'u8[4096]{0}', space=vmem, size = 0x1000, scoped, tag = 'input window, operand 1, single buffered']
    #allocation7 [shape = 's32[1]{0}', space=sflag, size = 0x4, scoped, tag = 'scoped memory for tpu_custom_call.1']
    #allocation8 [shape = 'u8[4096]{0}', space=vmem, size = 0x1000, scoped, tag = 'input window, operand 2, single buffered']
    #allocation9 [shape = 'u8[32768]{0}', space=vmem, size = 0x8000, scoped, tag = 'input window, operand 3, single buffered']
    #allocation10 [shape = 's32[1]{0}', space=sflag, size = 0x4, scoped, tag = 'scoped memory for tpu_custom_call.1']
    #allocation11 [shape = 'u8[32768]{0}', space=vmem, size = 0x8000, scoped, tag = 'output window, operand 0, single buffered']
    %10 = vsyncpa [#allocation4], 0
    %11 = vsyncpa [#allocation7], 0
    %12 = vsyncpa [#allocation10], 0
    %13 = vsyncpa [#allocation5], 0
    // Predicated region
    $region2: #{tpu_custom_call.1} parent=1 // pred_check
      _
    $region3: #{tpu_custom_call.1} parent=1 // pred_check_branch
      %15 = sbr.rel (0) target = $region5
    $region4: #{tpu_custom_call.1} parent=1 // pred_region
      %s17 = ssub.s32 512, 512
      %18 = vsyncadd [#allocation4], %s17
      %s19 = sshll.u32 [#allocation3], 4
      %s20 = int_to_ptr.vmem [resolvable:$true] %s19
      %25 = dma.hbm_to_vmem [thread:$0]  %s0, 512, %s20, [#allocation4], 64, 64, 4
    $region5: #{tpu_custom_call.1} parent=1 // pred_fallthru
      _
    // Predicated region
    $region6: #{tpu_custom_call.1} parent=1 // pred_check
      _
    $region7: #{tpu_custom_call.1} parent=1 // pred_check_branch
      %27 = sbr.rel (0) target = $region9
    $region8: #{tpu_custom_call.1} parent=1 // pred_region
      %s29 = ssub.s32 128, 128
      %30 = vsyncadd [#allocation7], %s29
      %s32 = sshll.u32 [#allocation6], 4
      %s33 = int_to_ptr.vmem [resolvable:$true] %s32
      %35 = dma.hbm_to_vmem [thread:$0]  %s1, 128, %s33, [#allocation7]
    $region9: #{tpu_custom_call.1} parent=1 // pred_fallthru
      _
    // Predicated region
    $region10: #{tpu_custom_call.1} parent=1 // pred_check
      _
    $region11: #{tpu_custom_call.1} parent=1 // pred_check_branch
      %37 = sbr.rel (0) target = $region13
    $region12: #{tpu_custom_call.1} parent=1 // pred_region
      %s39 = ssub.s32 128, 128
      %40 = vsyncadd [#allocation7], %s39
      %s41 = sshll.u32 [#allocation8], 4
      %s42 = int_to_ptr.vmem [resolvable:$true] %s41
      %47 = dma.hbm_to_vmem [thread:$0]  %s2, 128, %s42, [#allocation7], 64, 64, 4
    $region13: #{tpu_custom_call.1} parent=1 // pred_fallthru
      _
    // Predicated region
    $region14: #{tpu_custom_call.1} parent=1 // pred_check
      _
    $region15: #{tpu_custom_call.1} parent=1 // pred_check_branch
      %49 = sbr.rel (0) target = $region17
    $region16: #{tpu_custom_call.1} parent=1 // pred_region
      %s51 = ssub.s32 1024, 1024
      %52 = vsyncadd [#allocation10], %s51
      %s53 = sshll.u32 [#allocation9], 4
      %s54 = int_to_ptr.vmem [resolvable:$true] %s53
      %59 = dma.hbm_to_vmem [thread:$0]  %s3, 1024, %s54, [#allocation10], 64, 64, 4
    $region17: #{tpu_custom_call.1} parent=1 // pred_fallthru
      _
    // Predicated region
    $region18: #{tpu_custom_call.1} parent=1 // pred_check
      _
    $region19: #{tpu_custom_call.1} parent=1 // pred_check_branch
      %61 = sbr.rel (0) target = $region21
    $region20: #{tpu_custom_call.1} parent=1 // pred_region
      _
    $region21: #{tpu_custom_call.1} parent=1 // pred_fallthru
      _
    // Predicated region
    $region22: #{tpu_custom_call.1} parent=1 // pred_check
      _
    $region23: #{tpu_custom_call.1} parent=1 // pred_check_branch
      %63 = sbr.rel (0) target = $region25
    $region24: #{tpu_custom_call.1} parent=1 // pred_region
      %64 = dma.done [#allocation4], 512
    $region25: #{tpu_custom_call.1} parent=1 // pred_fallthru
      _
    // Predicated region
    $region26: #{tpu_custom_call.1} parent=1 // pred_check
      _
    $region27: #{tpu_custom_call.1} parent=1 // pred_check_branch
      %66 = sbr.rel (0) target = $region29
    $region28: #{tpu_custom_call.1} parent=1 // pred_region
      %67 = dma.done [#allocation7], 128
    $region29: #{tpu_custom_call.1} parent=1 // pred_fallthru
      _
    // Predicated region
    $region30: #{tpu_custom_call.1} parent=1 // pred_check
      _
    $region31: #{tpu_custom_call.1} parent=1 // pred_check_branch
      %69 = sbr.rel (0) target = $region33
    $region32: #{tpu_custom_call.1} parent=1 // pred_region
      %70 = dma.done [#allocation7], 128
    $region33: #{tpu_custom_call.1} parent=1 // pred_fallthru
      _
    // Predicated region
    $region34: #{tpu_custom_call.1} parent=1 // pred_check
      _
    $region35: #{tpu_custom_call.1} parent=1 // pred_check_branch
      %72 = sbr.rel (0) target = $region37
    $region36: #{tpu_custom_call.1} parent=1 // pred_region
      %73 = dma.done [#allocation10], 1024
    $region37: #{tpu_custom_call.1} parent=1 // pred_fallthru
      _
    %p75 = scmp.eq.s32.totalorder 0, 0
    // Predicated region
    $region38: #{tpu_custom_call.1} parent=1 // pred_check
      %p76 = pneg %p75
    $region39: #{tpu_custom_call.1} parent=1 // pred_check_branch
      %78 = sbr.rel (%p76) target = $region41
    $region40: #{tpu_custom_call.1} parent=1 // pred_region
      %v79 = vld [vmem:[#allocation6] sm:$0xff]
      %80 = vst [vmem:[#allocation2] sm:$0xff] %v79
    $region41: #{tpu_custom_call.1} parent=1 // pred_fallthru
      _
    %v81 = vld [vmem:[#allocation8] sm:$0xf]
    %v82 = vld [vmem:[#allocation8 + $0x4] sm:$0xf]
    %v83 = vld [vmem:[#allocation9] sm:$0xf]
    %v84 = vld [vmem:[#allocation9 + $0x4] sm:$0xf]
    %v85 = vld [vmem:[#allocation9 + $0x8] sm:$0xf]
    %v86 = vld [vmem:[#allocation9 + $0xc] sm:$0xf]
    %v87 = vld [vmem:[#allocation9 + $0x10] sm:$0xf]
    %v88 = vld [vmem:[#allocation9 + $0x14] sm:$0xf]
    %v89 = vld [vmem:[#allocation9 + $0x18] sm:$0xf]
    %v90 = vld [vmem:[#allocation9 + $0x1c] sm:$0xf]
    %v91 = vld [vmem:[#allocation9 + $0x20] sm:$0xf]
    %v92 = vld [vmem:[#allocation9 + $0x24] sm:$0xf]
    %v93 = vld [vmem:[#allocation9 + $0x28] sm:$0xf]
    %v94 = vld [vmem:[#allocation9 + $0x2c] sm:$0xf]
    %v95 = vld [vmem:[#allocation9 + $0x30] sm:$0xf]
    %v96 = vld [vmem:[#allocation9 + $0x34] sm:$0xf]
    %v97 = vld [vmem:[#allocation9 + $0x38] sm:$0xf]
    %v98 = vld [vmem:[#allocation9 + $0x3c] sm:$0xf]
    %v99 = vld [vmem:[%s4] sm:$0x1]
    %v100 = vld [vmem:[#allocation2] sm:$0xff]
    %v101 = vld [vmem:[#allocation3] sm:$0x1]
    %v102 = vld [vmem:[#allocation3 + $0x4] sm:$0x1]
    %v103 = vld [vmem:[#allocation3 + $0x8] sm:$0x1]
    %v104 = vld [vmem:[#allocation3 + $0xc] sm:$0x1]
    %v105 = vld [vmem:[#allocation3 + $0x10] sm:$0x1]
    %v106 = vld [vmem:[#allocation3 + $0x14] sm:$0x1]
    %v107 = vld [vmem:[#allocation3 + $0x18] sm:$0x1]
    %v108 = vld [vmem:[#allocation3 + $0x1c] sm:$0x1]
    %v110 = vlaneseq
    %v111 = vshrl.u32 %v110, 7
    %v112 = vsub.s32 0, %v111
    %v113 = vrot.slane %v99, %v112
    %v123 = vunpack.c.l.b16 %v101
    %v124 = vunpack.c.l.b16 %v102
    %v125 = vunpack.c.l.b16 %v103
    %v126 = vunpack.c.l.b16 %v104
    %v127 = vunpack.c.l.b16 %v105
    %v128 = vunpack.c.l.b16 %v106
    %v129 = vunpack.c.l.b16 %v107
    %v130 = vunpack.c.l.b16 %v108
    %v131 = vpack.c.b16 %v123, %v123
    %v132 = vpack.c.b16 %v124, %v124
    %v133 = vpack.c.b16 %v125, %v125
    %v134 = vpack.c.b16 %v126, %v126
    %v135 = vpack.c.b16 %v127, %v127
    %v136 = vpack.c.b16 %v128, %v128
    %v137 = vpack.c.b16 %v129, %v129
    %v138 = vpack.c.b16 %v130, %v130
    %v139 = vunpack.c.l.b16 %v131
    %v140 = vunpack.c.l.b16 %v132
    %v141 = vunpack.c.l.b16 %v133
    %v142 = vunpack.c.l.b16 %v134
    %v143 = vunpack.c.l.b16 %v135
    %v144 = vunpack.c.l.b16 %v136
    %v145 = vunpack.c.l.b16 %v137
    %v146 = vunpack.c.l.b16 %v138
    %v147 = vrot.slane %v140, 7
    %vm148 = vcmask 1041409
    %v149 = vsel %vm148, %v147, %v139
    %v150 = vrot.slane %v141, 6
    %vm151 = vcmask 1042434
    %v152 = vsel %vm151, %v150, %v149
    %v153 = vrot.slane %v142, 5
    %vm154 = vcmask 1043459
    %v155 = vsel %vm154, %v153, %v152
    %v156 = vrot.slane %v143, 4
    %vm157 = vcmask 1044484
    %v158 = vsel %vm157, %v156, %v155
    %v159 = vrot.slane %v144, 3
    %vm160 = vcmask 1045509
    %v161 = vsel %vm160, %v159, %v158
    %v162 = vrot.slane %v145, 2
    %vm163 = vcmask 1046534
    %v164 = vsel %vm163, %v162, %v161
    %v165 = vrot.slane %v146, 1
    %vm166 = vcmask 1047559
    %v167 = vsel %vm166, %v165, %v164
    %v168 = vpack.c.b16 %v167, %v167
    %v171 = vunpack.c.l.b16 %v81
    %v172 = vunpack.c.l.b16 %v82
    %v173 = vpack.c.b16 %v172, %v171
    %vm175 = vcmask 130048
    %v177 = vsel %vm175, %v168, 0
    %179 = vmatprep.subr.bf16.mxu0 0
    %180 = vmatpush1.bf16.msra.mxu0 %v173
    %181 = vmatprep.subr.bf16.mxu0 0
    %182 = vmatpush1.bf16.msra.mxu0 0
    %183 = vmatprep.subr.bf16.mxu0 0
    %184 = vmatpush1.bf16.msra.mxu0 0
    %185 = vmatprep.subr.bf16.mxu0 0
    %186 = vmatpush1.bf16.msra.mxu0 0
    %187 = vmatprep.subr.bf16.mxu0 0
    %188 = vmatpush1.bf16.msra.mxu0 0
    %189 = vmatprep.subr.bf16.mxu0 0
    %190 = vmatpush1.bf16.msra.mxu0 0
    %191 = vmatprep.subr.bf16.mxu0 0
    %192 = vmatpush1.bf16.msra.mxu0 0
    %193 = vmatprep.subr.bf16.mxu0 0
    %194 = vmatpush1.bf16.msra.mxu0 0
    %195 = vmatprep.subr.bf16.mxu0 0
    %196 = vmatpush1.bf16.msra.mxu0 0
    %197 = vmatprep.subr.bf16.mxu0 0
    %198 = vmatpush1.bf16.msra.mxu0 0
    %199 = vmatprep.subr.bf16.mxu0 0
    %200 = vmatpush1.bf16.msra.mxu0 0
    %201 = vmatprep.subr.bf16.mxu0 0
    %202 = vmatpush1.bf16.msra.mxu0 0
    %203 = vmatprep.subr.bf16.mxu0 0
    %204 = vmatpush1.bf16.msra.mxu0 0
    %205 = vmatprep.subr.bf16.mxu0 0
    %206 = vmatpush1.bf16.msra.mxu0 0
    %207 = vmatprep.subr.bf16.mxu0 0
    %208 = vmatpush1.bf16.msra.mxu0 0
    %209 = vmatprep.subr.bf16.mxu0 0
    %210 = vmatpush1.bf16.msra.mxu0 0
    %211 = vmatprep.mubr.bf16.mxu0 0
    %212 = vmatmul.mubr.bf16.gmra.mrb[0].mxu0 %v177
    %v213 = vpop.f32.mrb[0].mxu0
    %v214 = vadd.f32 %v113, %v213
    %v215 = vpop.f32.mrb[0].mxu0
    %v216 = vpop.f32.mrb[0].mxu0
    %v217 = vpop.f32.mrb[0].mxu0
    %218 = vdwg.mxu0
    %v219 = vpack.c.bf16 %v100, %v100
    %v236 = vunpack.c.l.b16 %v83
    %v237 = vunpack.c.l.b16 %v84
    %v238 = vunpack.c.l.b16 %v85
    %v239 = vunpack.c.l.b16 %v86
    %v240 = vunpack.c.l.b16 %v87
    %v241 = vunpack.c.l.b16 %v88
    %v242 = vunpack.c.l.b16 %v89
    %v243 = vunpack.c.l.b16 %v90
    %v244 = vunpack.c.l.b16 %v91
    %v245 = vunpack.c.l.b16 %v92
    %v246 = vunpack.c.l.b16 %v93
    %v247 = vunpack.c.l.b16 %v94
    %v248 = vunpack.c.l.b16 %v95
    %v249 = vunpack.c.l.b16 %v96
    %v250 = vunpack.c.l.b16 %v97
    %v251 = vunpack.c.l.b16 %v98
    %v252 = vpack.c.b16 %v237, %v236
    %v253 = vpack.c.b16 %v239, %v238
    %v254 = vpack.c.b16 %v241, %v240
    %v255 = vpack.c.b16 %v243, %v242
    %v256 = vpack.c.b16 %v245, %v244
    %v257 = vpack.c.b16 %v247, %v246
    %v258 = vpack.c.b16 %v249, %v248
    %v259 = vpack.c.b16 %v251, %v250
    %268 = vmatprep.subr.bf16.mxu0 0
    %269 = vmatpush1.bf16.msra.mxu0 %v252
    %270 = vmatprep.subr.bf16.mxu0 0
    %271 = vmatpush1.bf16.msra.mxu0 %v253
    %272 = vmatprep.subr.bf16.mxu0 0
    %273 = vmatpush1.bf16.msra.mxu0 %v254
    %274 = vmatprep.subr.bf16.mxu0 0
    %275 = vmatpush1.bf16.msra.mxu0 %v255
    %276 = vmatprep.subr.bf16.mxu0 0
    %277 = vmatpush1.bf16.msra.mxu0 %v256
    %278 = vmatprep.subr.bf16.mxu0 0
    %279 = vmatpush1.bf16.msra.mxu0 %v257
    %280 = vmatprep.subr.bf16.mxu0 0
    %281 = vmatpush1.bf16.msra.mxu0 %v258
    %282 = vmatprep.subr.bf16.mxu0 0
    %283 = vmatpush1.bf16.msra.mxu0 %v259
    %284 = vmatprep.subr.bf16.mxu0 0
    %285 = vmatpush1.bf16.msra.mxu0 0
    %286 = vmatprep.subr.bf16.mxu0 0
    %287 = vmatpush1.bf16.msra.mxu0 0
    %288 = vmatprep.subr.bf16.mxu0 0
    %289 = vmatpush1.bf16.msra.mxu0 0
    %290 = vmatprep.subr.bf16.mxu0 0
    %291 = vmatpush1.bf16.msra.mxu0 0
    %292 = vmatprep.subr.bf16.mxu0 0
    %293 = vmatpush1.bf16.msra.mxu0 0
    %294 = vmatprep.subr.bf16.mxu0 0
    %295 = vmatpush1.bf16.msra.mxu0 0
    %296 = vmatprep.subr.bf16.mxu0 0
    %297 = vmatpush1.bf16.msra.mxu0 0
    %298 = vmatprep.subr.bf16.mxu0 0
    %299 = vmatpush1.bf16.msra.mxu0 0
    %300 = vmatprep.mubr.bf16.mxu0 0
    %301 = vmatmul.mubr.bf16.gmra.mrb[0].mxu0 %v219
    %v302 = vpop.f32.mrb[0].mxu0
    %v303 = vadd.f32 %v214, %v302
    %v304 = vpop.f32.mrb[0].mxu0
    %v305 = vpop.f32.mrb[0].mxu0
    %v306 = vpop.f32.mrb[0].mxu0
    %307 = vdwg.mxu0
    %v308 = vtanh.pop %v303
    %v310 = vcombine.high %v308, %v308
    %v312 = vunpack.c.l.s4 1966171168
    %v313 = vunpack.c.0.s8 %v312
    %v314 = vlaneseq
    %v315 = vshrl.u32 %v314, 7
    %v316 = vsub.s32 %v313, %v315
    %v317 = vrot.slane %v308, %v316
    %v319 = vunpack.c.l.s4 1966171168
    %v320 = vunpack.c.0.s8 %v319
    %v321 = vlaneseq
    %v322 = vshrl.u32 %v321, 7
    %v323 = vsub.s32 %v320, %v322
    %v324 = vrot.slane %v310, %v323
    %v325 = vcombine.high %v317, %v317
    %v326 = vcombine.high %v324, %v324
    %v328 = vunpack.c.l.s4 1966171168
    %v329 = vunpack.c.0.s8 %v328
    %v330 = vlaneseq
    %v331 = vshrl.u32 %v330, 7
    %v332 = vsub.s32 %v329, %v331
    %v333 = vrot.slane %v317, %v332
    %v335 = vunpack.c.l.s4 1966171168
    %v336 = vunpack.c.0.s8 %v335
    %v337 = vlaneseq
    %v338 = vshrl.u32 %v337, 7
    %v339 = vsub.s32 %v336, %v338
    %v340 = vrot.slane %v324, %v339
    %v342 = vunpack.c.l.s4 1966171168
    %v343 = vunpack.c.0.s8 %v342
    %v344 = vlaneseq
    %v345 = vshrl.u32 %v344, 7
    %v346 = vsub.s32 %v343, %v345
    %v347 = vrot.slane %v325, %v346
    %v349 = vunpack.c.l.s4 1966171168
    %v350 = vunpack.c.0.s8 %v349
    %v351 = vlaneseq
    %v352 = vshrl.u32 %v351, 7
    %v353 = vsub.s32 %v350, %v352
    %v354 = vrot.slane %v326, %v353
    %v355 = vcombine.high %v333, %v333
    %v356 = vcombine.high %v340, %v340
    %v357 = vcombine.high %v347, %v347
    %v358 = vcombine.high %v354, %v354
    %367 = vst [vmem:[#allocation11] sm:$0x1] %v333
    %368 = vst [vmem:[#allocation11 + $0x8] sm:$0x1] %v347
    %369 = vst [vmem:[#allocation11 + $0x10] sm:$0x1] %v355
    %370 = vst [vmem:[#allocation11 + $0x18] sm:$0x1] %v357
    %371 = vst [vmem:[#allocation11 + $0x20] sm:$0x1] %v340
    %372 = vst [vmem:[#allocation11 + $0x28] sm:$0x1] %v354
    %373 = vst [vmem:[#allocation11 + $0x30] sm:$0x1] %v356
    %374 = vst [vmem:[#allocation11 + $0x38] sm:$0x1] %v358
    %v375 = vld [vmem:[#allocation3] sm:$0x1]
    %v376 = vld [vmem:[#allocation3 + $0x4] sm:$0x1]
    %v377 = vld [vmem:[#allocation3 + $0x8] sm:$0x1]
    %v378 = vld [vmem:[#allocation3 + $0xc] sm:$0x1]
    %v379 = vld [vmem:[#allocation3 + $0x10] sm:$0x1]
    %v380 = vld [vmem:[#allocation3 + $0x14] sm:$0x1]
    %v381 = vld [vmem:[#allocation3 + $0x18] sm:$0x1]
    %v382 = vld [vmem:[#allocation3 + $0x1c] sm:$0x1]
    %v391 = vunpack.c.l.b16 %v375
    %v392 = vunpack.c.l.b16 %v376
    %v393 = vunpack.c.l.b16 %v377
    %v394 = vunpack.c.l.b16 %v378
    %v395 = vunpack.c.l.b16 %v379
    %v396 = vunpack.c.l.b16 %v380
    %v397 = vunpack.c.l.b16 %v381
    %v398 = vunpack.c.l.b16 %v382
    %v399 = vpack.c.b16 %v391, %v391
    %v400 = vpack.c.b16 %v392, %v392
    %v401 = vpack.c.b16 %v393, %v393
    %v402 = vpack.c.b16 %v394, %v394
    %v403 = vpack.c.b16 %v395, %v395
    %v404 = vpack.c.b16 %v396, %v396
    %v405 = vpack.c.b16 %v397, %v397
    %v406 = vpack.c.b16 %v398, %v398
    %v407 = vunpack.c.l.b16 %v399
    %v408 = vunpack.c.l.b16 %v400
    %v409 = vunpack.c.l.b16 %v401
    %v410 = vunpack.c.l.b16 %v402
    %v411 = vunpack.c.l.b16 %v403
    %v412 = vunpack.c.l.b16 %v404
    %v413 = vunpack.c.l.b16 %v405
    %v414 = vunpack.c.l.b16 %v406
    %v415 = vrot.slane %v407, 1
    %v416 = vsel %vm148, %v408, %v415
    %v417 = vrot.slane %v409, 7
    %v418 = vsel %vm151, %v417, %v416
    %v419 = vrot.slane %v410, 6
    %v420 = vsel %vm154, %v419, %v418
    %v421 = vrot.slane %v411, 5
    %v422 = vsel %vm157, %v421, %v420
    %v423 = vrot.slane %v412, 4
    %v424 = vsel %vm160, %v423, %v422
    %v425 = vrot.slane %v413, 3
    %v426 = vsel %vm163, %v425, %v424
    %v427 = vrot.slane %v414, 2
    %v428 = vsel %vm166, %v427, %v426
    %v429 = vpack.c.b16 %v428, %v428
    %v431 = vsel %vm175, %v429, 0
    %433 = vmatprep.subr.bf16.mxu0 0
    %434 = vmatpush1.bf16.msra.mxu0 %v173
    %435 = vmatprep.subr.bf16.mxu0 0
    %436 = vmatpush1.bf16.msra.mxu0 0
    %437 = vmatprep.subr.bf16.mxu0 0
    %438 = vmatpush1.bf16.msra.mxu0 0
    %439 = vmatprep.subr.bf16.mxu0 0
    %440 = vmatpush1.bf16.msra.mxu0 0
    %441 = vmatprep.subr.bf16.mxu0 0
    %442 = vmatpush1.bf16.msra.mxu0 0
    %443 = vmatprep.subr.bf16.mxu0 0
    %444 = vmatpush1.bf16.msra.mxu0 0
    %445 = vmatprep.subr.bf16.mxu0 0
    %446 = vmatpush1.bf16.msra.mxu0 0
    %447 = vmatprep.subr.bf16.mxu0 0
    %448 = vmatpush1.bf16.msra.mxu0 0
    %449 = vmatprep.subr.bf16.mxu0 0
    %450 = vmatpush1.bf16.msra.mxu0 0
    %451 = vmatprep.subr.bf16.mxu0 0
    %452 = vmatpush1.bf16.msra.mxu0 0
    %453 = vmatprep.subr.bf16.mxu0 0
    %454 = vmatpush1.bf16.msra.mxu0 0
    %455 = vmatprep.subr.bf16.mxu0 0
    %456 = vmatpush1.bf16.msra.mxu0 0
    %457 = vmatprep.subr.bf16.mxu0 0
    %458 = vmatpush1.bf16.msra.mxu0 0
    %459 = vmatprep.subr.bf16.mxu0 0
    %460 = vmatpush1.bf16.msra.mxu0 0
    %461 = vmatprep.subr.bf16.mxu0 0
    %462 = vmatpush1.bf16.msra.mxu0 0
    %463 = vmatprep.subr.bf16.mxu0 0
    %464 = vmatpush1.bf16.msra.mxu0 0
    %465 = vmatprep.mubr.bf16.mxu0 0
    %466 = vmatmul.mubr.bf16.gmra.mrb[0].mxu0 %v431
    %v467 = vpop.f32.mrb[0].mxu0
    %v468 = vadd.f32 %v113, %v467
    %v469 = vpop.f32.mrb[0].mxu0
    %v470 = vpop.f32.mrb[0].mxu0
    %v471 = vpop.f32.mrb[0].mxu0
    %472 = vdwg.mxu0
    %v473 = vpack.c.bf16 %v308, %v308
    %474 = vmatprep.subr.bf16.mxu0 0
    %475 = vmatpush1.bf16.msra.mxu0 %v252
    %476 = vmatprep.subr.bf16.mxu0 0
    %477 = vmatpush1.bf16.msra.mxu0 %v253
    %478 = vmatprep.subr.bf16.mxu0 0
    %479 = vmatpush1.bf16.msra.mxu0 %v254
    %480 = vmatprep.subr.bf16.mxu0 0
    %481 = vmatpush1.bf16.msra.mxu0 %v255
    %482 = vmatprep.subr.bf16.mxu0 0
    %483 = vmatpush1.bf16.msra.mxu0 %v256
    %484 = vmatprep.subr.bf16.mxu0 0
    %485 = vmatpush1.bf16.msra.mxu0 %v257
    %486 = vmatprep.subr.bf16.mxu0 0
    %487 = vmatpush1.bf16.msra.mxu0 %v258
    %488 = vmatprep.subr.bf16.mxu0 0
    %489 = vmatpush1.bf16.msra.mxu0 %v259
    %490 = vmatprep.subr.bf16.mxu0 0
    %491 = vmatpush1.bf16.msra.mxu0 0
    %492 = vmatprep.subr.bf16.mxu0 0
    %493 = vmatpush1.bf16.msra.mxu0 0
    %494 = vmatprep.subr.bf16.mxu0 0
    %495 = vmatpush1.bf16.msra.mxu0 0
    %496 = vmatprep.subr.bf16.mxu0 0
    %497 = vmatpush1.bf16.msra.mxu0 0
    %498 = vmatprep.subr.bf16.mxu0 0
    %499 = vmatpush1.bf16.msra.mxu0 0
    %500 = vmatprep.subr.bf16.mxu0 0
    %501 = vmatpush1.bf16.msra.mxu0 0
    %502 = vmatprep.subr.bf16.mxu0 0
    %503 = vmatpush1.bf16.msra.mxu0 0
    %504 = vmatprep.subr.bf16.mxu0 0
    %505 = vmatpush1.bf16.msra.mxu0 0
    %506 = vmatprep.mubr.bf16.mxu0 0
    %507 = vmatmul.mubr.bf16.gmra.mrb[0].mxu0 %v473
    %v508 = vpop.f32.mrb[0].mxu0
    %v509 = vadd.f32 %v468, %v508
    %v510 = vpop.f32.mrb[0].mxu0
    %v511 = vpop.f32.mrb[0].mxu0
    %v512 = vpop.f32.mrb[0].mxu0
    %513 = vdwg.mxu0
    %v514 = vtanh.pop %v509
    %v516 = vcombine.high %v514, %v514
    %v518 = vunpack.c.l.s4 1966171168
    %v519 = vunpack.c.0.s8 %v518
    %v520 = vlaneseq
    %v521 = vshrl.u32 %v520, 7
    %v522 = vsub.s32 %v519, %v521
    %v523 = vrot.slane %v514, %v522
    %v525 = vunpack.c.l.s4 1966171168
    %v526 = vunpack.c.0.s8 %v525
    %v527 = vlaneseq
    %v528 = vshrl.u32 %v527, 7
    %v529 = vsub.s32 %v526, %v528
    %v530 = vrot.slane %v516, %v529
    %v531 = vcombine.high %v523, %v523
    %v532 = vcombine.high %v530, %v530
    %v534 = vunpack.c.l.s4 1966171168
    %v535 = vunpack.c.0.s8 %v534
    %v536 = vlaneseq
    %v537 = vshrl.u32 %v536, 7
    %v538 = vsub.s32 %v535, %v537
    %v539 = vrot.slane %v523, %v538
    %v541 = vunpack.c.l.s4 1966171168
    %v542 = vunpack.c.0.s8 %v541
    %v543 = vlaneseq
    %v544 = vshrl.u32 %v543, 7
    %v545 = vsub.s32 %v542, %v544
    %v546 = vrot.slane %v530, %v545
    %v548 = vunpack.c.l.s4 1966171168
    %v549 = vunpack.c.0.s8 %v548
    %v550 = vlaneseq
    %v551 = vshrl.u32 %v550, 7
    %v552 = vsub.s32 %v549, %v551
    %v553 = vrot.slane %v531, %v552
    %v555 = vunpack.c.l.s4 1966171168
    %v556 = vunpack.c.0.s8 %v555
    %v557 = vlaneseq
    %v558 = vshrl.u32 %v557, 7
    %v559 = vsub.s32 %v556, %v558
    %v560 = vrot.slane %v532, %v559
    %v561 = vcombine.high %v539, %v539
    %v562 = vcombine.high %v546, %v546
    %v563 = vcombine.high %v553, %v553
    %v564 = vcombine.high %v560, %v560
    %573 = vst [vmem:[#allocation11 + $0x1] sm:$0x1] %v539
    %574 = vst [vmem:[#allocation11 + $0x9] sm:$0x1] %v553
    %575 = vst [vmem:[#allocation11 + $0x11] sm:$0x1] %v561
    %576 = vst [vmem:[#allocation11 + $0x19] sm:$0x1] %v563
    %577 = vst [vmem:[#allocation11 + $0x21] sm:$0x1] %v546
    %578 = vst [vmem:[#allocation11 + $0x29] sm:$0x1] %v560
    %579 = vst [vmem:[#allocation11 + $0x31] sm:$0x1] %v562
    %580 = vst [vmem:[#allocation11 + $0x39] sm:$0x1] %v564
    %v581 = vld [vmem:[#allocation3] sm:$0x2]
    %v582 = vld [vmem:[#allocation3 + $0x4] sm:$0x2]
    %v583 = vld [vmem:[#allocation3 + $0x8] sm:$0x2]
    %v584 = vld [vmem:[#allocation3 + $0xc] sm:$0x2]
    %v585 = vld [vmem:[#allocation3 + $0x10] sm:$0x2]
    %v586 = vld [vmem:[#allocation3 + $0x14] sm:$0x2]
    %v587 = vld [vmem:[#allocation3 + $0x18] sm:$0x2]
    %v588 = vld [vmem:[#allocation3 + $0x1c] sm:$0x2]
    %v597 = vunpack.c.l.b16 %v581
    %v598 = vunpack.c.l.b16 %v582
    %v599 = vunpack.c.l.b16 %v583
    %v600 = vunpack.c.l.b16 %v584
    %v601 = vunpack.c.l.b16 %v585
    %v602 = vunpack.c.l.b16 %v586
    %v603 = vunpack.c.l.b16 %v587
    %v604 = vunpack.c.l.b16 %v588
    %v605 = vpack.c.b16 %v597, %v597
    %v606 = vpack.c.b16 %v598, %v598
    %v607 = vpack.c.b16 %v599, %v599
    %v608 = vpack.c.b16 %v600, %v600
    %v609 = vpack.c.b16 %v601, %v601
    %v610 = vpack.c.b16 %v602, %v602
    %v611 = vpack.c.b16 %v603, %v603
    %v612 = vpack.c.b16 %v604, %v604
    %v613 = vunpack.c.l.b16 %v605
    %v614 = vunpack.c.l.b16 %v606
    %v615 = vunpack.c.l.b16 %v607
    %v616 = vunpack.c.l.b16 %v608
    %v617 = vunpack.c.l.b16 %v609
    %v618 = vunpack.c.l.b16 %v610
    %v619 = vunpack.c.l.b16 %v611
    %v620 = vunpack.c.l.b16 %v612
    %v621 = vrot.slane %v613, 2
    %v622 = vrot.slane %v614, 1
    %v623 = vsel %vm148, %v622, %v621
    %v624 = vsel %vm151, %v615, %v623
    %v625 = vrot.slane %v616, 7
    %v626 = vsel %vm154, %v625, %v624
    %v627 = vrot.slane %v617, 6
    %v628 = vsel %vm157, %v627, %v626
    %v629 = vrot.slane %v618, 5
    %v630 = vsel %vm160, %v629, %v628
    %v631 = vrot.slane %v619, 4
    %v632 = vsel %vm163, %v631, %v630
    %v633 = vrot.slane %v620, 3
    %v634 = vsel %vm166, %v633, %v632
    %v635 = vpack.c.b16 %v634, %v634
    %v637 = vsel %vm175, %v635, 0
    %639 = vmatprep.subr.bf16.mxu0 0
    %640 = vmatpush1.bf16.msra.mxu0 %v173
    %641 = vmatprep.subr.bf16.mxu0 0
    %642 = vmatpush1.bf16.msra.mxu0 0
    %643 = vmatprep.subr.bf16.mxu0 0
    %644 = vmatpush1.bf16.msra.mxu0 0
    %645 = vmatprep.subr.bf16.mxu0 0
    %646 = vmatpush1.bf16.msra.mxu0 0
    %647 = vmatprep.subr.bf16.mxu0 0
    %648 = vmatpush1.bf16.msra.mxu0 0
    %649 = vmatprep.subr.bf16.mxu0 0
    %650 = vmatpush1.bf16.msra.mxu0 0
    %651 = vmatprep.subr.bf16.mxu0 0
    %652 = vmatpush1.bf16.msra.mxu0 0
    %653 = vmatprep.subr.bf16.mxu0 0
    %654 = vmatpush1.bf16.msra.mxu0 0
    %655 = vmatprep.subr.bf16.mxu0 0
    %656 = vmatpush1.bf16.msra.mxu0 0
    %657 = vmatprep.subr.bf16.mxu0 0
    %658 = vmatpush1.bf16.msra.mxu0 0
    %659 = vmatprep.subr.bf16.mxu0 0
    %660 = vmatpush1.bf16.msra.mxu0 0
    %661 = vmatprep.subr.bf16.mxu0 0
    %662 = vmatpush1.bf16.msra.mxu0 0
    %663 = vmatprep.subr.bf16.mxu0 0
    %664 = vmatpush1.bf16.msra.mxu0 0
    %665 = vmatprep.subr.bf16.mxu0 0
    %666 = vmatpush1.bf16.msra.mxu0 0
    %667 = vmatprep.subr.bf16.mxu0 0
    %668 = vmatpush1.bf16.msra.mxu0 0
    %669 = vmatprep.subr.bf16.mxu0 0
    %670 = vmatpush1.bf16.msra.mxu0 0
    %671 = vmatprep.mubr.bf16.mxu0 0
    %672 = vmatmul.mubr.bf16.gmra.mrb[0].mxu0 %v637
    %v673 = vpop.f32.mrb[0].mxu0
    %v674 = vadd.f32 %v113, %v673
    %v675 = vpop.f32.mrb[0].mxu0
    %v676 = vpop.f32.mrb[0].mxu0
    %v677 = vpop.f32.mrb[0].mxu0
    %678 = vdwg.mxu0
    %v679 = vpack.c.bf16 %v514, %v514
    %680 = vmatprep.subr.bf16.mxu0 0
    %681 = vmatpush1.bf16.msra.mxu0 %v252
    %682 = vmatprep.subr.bf16.mxu0 0
    %683 = vmatpush1.bf16.msra.mxu0 %v253
    %684 = vmatprep.subr.bf16.mxu0 0
    %685 = vmatpush1.bf16.msra.mxu0 %v254
    %686 = vmatprep.subr.bf16.mxu0 0
    %687 = vmatpush1.bf16.msra.mxu0 %v255
    %688 = vmatprep.subr.bf16.mxu0 0
    %689 = vmatpush1.bf16.msra.mxu0 %v256
    %690 = vmatprep.subr.bf16.mxu0 0
    %691 = vmatpush1.bf16.msra.mxu0 %v257
    %692 = vmatprep.subr.bf16.mxu0 0
    %693 = vmatpush1.bf16.msra.mxu0 %v258
    %694 = vmatprep.subr.bf16.mxu0 0
    %695 = vmatpush1.bf16.msra.mxu0 %v259
    %696 = vmatprep.subr.bf16.mxu0 0
    %697 = vmatpush1.bf16.msra.mxu0 0
    %698 = vmatprep.subr.bf16.mxu0 0
    %699 = vmatpush1.bf16.msra.mxu0 0
    %700 = vmatprep.subr.bf16.mxu0 0
    %701 = vmatpush1.bf16.msra.mxu0 0
    %702 = vmatprep.subr.bf16.mxu0 0
    %703 = vmatpush1.bf16.msra.mxu0 0
    %704 = vmatprep.subr.bf16.mxu0 0
    %705 = vmatpush1.bf16.msra.mxu0 0
    %706 = vmatprep.subr.bf16.mxu0 0
    %707 = vmatpush1.bf16.msra.mxu0 0
    %708 = vmatprep.subr.bf16.mxu0 0
    %709 = vmatpush1.bf16.msra.mxu0 0
    %710 = vmatprep.subr.bf16.mxu0 0
    %711 = vmatpush1.bf16.msra.mxu0 0
    %712 = vmatprep.mubr.bf16.mxu0 0
    %713 = vmatmul.mubr.bf16.gmra.mrb[0].mxu0 %v679
    %v714 = vpop.f32.mrb[0].mxu0
    %v715 = vadd.f32 %v674, %v714
    %v716 = vpop.f32.mrb[0].mxu0
    %v717 = vpop.f32.mrb[0].mxu0
    %v718 = vpop.f32.mrb[0].mxu0
    %719 = vdwg.mxu0
    %v720 = vtanh.pop %v715
    %v722 = vcombine.high %v720, %v720
    %v724 = vunpack.c.l.s4 1966171168
    %v725 = vunpack.c.0.s8 %v724
    %v726 = vlaneseq
    %v727 = vshrl.u32 %v726, 7
    %v728 = vsub.s32 %v725, %v727
    %v729 = vrot.slane %v720, %v728
    %v731 = vunpack.c.l.s4 1966171168
    %v732 = vunpack.c.0.s8 %v731
    %v733 = vlaneseq
    %v734 = vshrl.u32 %v733, 7
    %v735 = vsub.s32 %v732, %v734
    %v736 = vrot.slane %v722, %v735
    %v737 = vcombine.high %v729, %v729
    %v738 = vcombine.high %v736, %v736
    %v740 = vunpack.c.l.s4 1966171168
    %v741 = vunpack.c.0.s8 %v740
    %v742 = vlaneseq
    %v743 = vshrl.u32 %v742, 7
    %v744 = vsub.s32 %v741, %v743
    %v745 = vrot.slane %v729, %v744
    %v747 = vunpack.c.l.s4 1966171168
    %v748 = vunpack.c.0.s8 %v747
    %v749 = vlaneseq
    %v750 = vshrl.u32 %v749, 7
    %v751 = vsub.s32 %v748, %v750
    %v752 = vrot.slane %v736, %v751
    %v754 = vunpack.c.l.s4 1966171168
    %v755 = vunpack.c.0.s8 %v754
    %v756 = vlaneseq
    %v757 = vshrl.u32 %v756, 7
    %v758 = vsub.s32 %v755, %v757
    %v759 = vrot.slane %v737, %v758
    %v761 = vunpack.c.l.s4 1966171168
    %v762 = vunpack.c.0.s8 %v761
    %v763 = vlaneseq
    %v764 = vshrl.u32 %v763, 7
    %v765 = vsub.s32 %v762, %v764
    %v766 = vrot.slane %v738, %v765
    %v767 = vcombine.high %v745, %v745
    %v768 = vcombine.high %v752, %v752
    %v769 = vcombine.high %v759, %v759
    %v770 = vcombine.high %v766, %v766
    %779 = vst [vmem:[#allocation11 + $0x2] sm:$0x1] %v745
    %780 = vst [vmem:[#allocation11 + $0xa] sm:$0x1] %v759
    %781 = vst [vmem:[#allocation11 + $0x12] sm:$0x1] %v767
    %782 = vst [vmem:[#allocation11 + $0x1a] sm:$0x1] %v769
    %783 = vst [vmem:[#allocation11 + $0x22] sm:$0x1] %v752
    %784 = vst [vmem:[#allocation11 + $0x2a] sm:$0x1] %v766
    %785 = vst [vmem:[#allocation11 + $0x32] sm:$0x1] %v768
    %786 = vst [vmem:[#allocation11 + $0x3a] sm:$0x1] %v770
    %v787 = vld [vmem:[#allocation3] sm:$0x2]
    %v788 = vld [vmem:[#allocation3 + $0x4] sm:$0x2]
    %v789 = vld [vmem:[#allocation3 + $0x8] sm:$0x2]
    %v790 = vld [vmem:[#allocation3 + $0xc] sm:$0x2]
    %v791 = vld [vmem:[#allocation3 + $0x10] sm:$0x2]
    %v792 = vld [vmem:[#allocation3 + $0x14] sm:$0x2]
    %v793 = vld [vmem:[#allocation3 + $0x18] sm:$0x2]
    %v794 = vld [vmem:[#allocation3 + $0x1c] sm:$0x2]
    %v803 = vunpack.c.l.b16 %v787
    %v804 = vunpack.c.l.b16 %v788
    %v805 = vunpack.c.l.b16 %v789
    %v806 = vunpack.c.l.b16 %v790
    %v807 = vunpack.c.l.b16 %v791
    %v808 = vunpack.c.l.b16 %v792
    %v809 = vunpack.c.l.b16 %v793
    %v810 = vunpack.c.l.b16 %v794
    %v811 = vpack.c.b16 %v803, %v803
    %v812 = vpack.c.b16 %v804, %v804
    %v813 = vpack.c.b16 %v805, %v805
    %v814 = vpack.c.b16 %v806, %v806
    %v815 = vpack.c.b16 %v807, %v807
    %v816 = vpack.c.b16 %v808, %v808
    %v817 = vpack.c.b16 %v809, %v809
    %v818 = vpack.c.b16 %v810, %v810
    %v819 = vunpack.c.l.b16 %v811
    %v820 = vunpack.c.l.b16 %v812
    %v821 = vunpack.c.l.b16 %v813
    %v822 = vunpack.c.l.b16 %v814
    %v823 = vunpack.c.l.b16 %v815
    %v824 = vunpack.c.l.b16 %v816
    %v825 = vunpack.c.l.b16 %v817
    %v826 = vunpack.c.l.b16 %v818
    %v827 = vrot.slane %v819, 3
    %v828 = vrot.slane %v820, 2
    %v829 = vsel %vm148, %v828, %v827
    %v830 = vrot.slane %v821, 1
    %v831 = vsel %vm151, %v830, %v829
    %v832 = vsel %vm154, %v822, %v831
    %v833 = vrot.slane %v823, 7
    %v834 = vsel %vm157, %v833, %v832
    %v835 = vrot.slane %v824, 6
    %v836 = vsel %vm160, %v835, %v834
    %v837 = vrot.slane %v825, 5
    %v838 = vsel %vm163, %v837, %v836
    %v839 = vrot.slane %v826, 4
    %v840 = vsel %vm166, %v839, %v838
    %v841 = vpack.c.b16 %v840, %v840
    %v843 = vsel %vm175, %v841, 0
    %845 = vmatprep.subr.bf16.mxu0 0
    %846 = vmatpush1.bf16.msra.mxu0 %v173
    %847 = vmatprep.subr.bf16.mxu0 0
    %848 = vmatpush1.bf16.msra.mxu0 0
    %849 = vmatprep.subr.bf16.mxu0 0
    %850 = vmatpush1.bf16.msra.mxu0 0
    %851 = vmatprep.subr.bf16.mxu0 0
    %852 = vmatpush1.bf16.msra.mxu0 0
    %853 = vmatprep.subr.bf16.mxu0 0
    %854 = vmatpush1.bf16.msra.mxu0 0
    %855 = vmatprep.subr.bf16.mxu0 0
    %856 = vmatpush1.bf16.msra.mxu0 0
    %857 = vmatprep.subr.bf16.mxu0 0
    %858 = vmatpush1.bf16.msra.mxu0 0
    %859 = vmatprep.subr.bf16.mxu0 0
    %860 = vmatpush1.bf16.msra.mxu0 0
    %861 = vmatprep.subr.bf16.mxu0 0
    %862 = vmatpush1.bf16.msra.mxu0 0
    %863 = vmatprep.subr.bf16.mxu0 0
    %864 = vmatpush1.bf16.msra.mxu0 0
    %865 = vmatprep.subr.bf16.mxu0 0
    %866 = vmatpush1.bf16.msra.mxu0 0
    %867 = vmatprep.subr.bf16.mxu0 0
    %868 = vmatpush1.bf16.msra.mxu0 0
    %869 = vmatprep.subr.bf16.mxu0 0
    %870 = vmatpush1.bf16.msra.mxu0 0
    %871 = vmatprep.subr.bf16.mxu0 0
    %872 = vmatpush1.bf16.msra.mxu0 0
    %873 = vmatprep.subr.bf16.mxu0 0
    %874 = vmatpush1.bf16.msra.mxu0 0
    %875 = vmatprep.subr.bf16.mxu0 0
    %876 = vmatpush1.bf16.msra.mxu0 0
    %877 = vmatprep.mubr.bf16.mxu0 0
    %878 = vmatmul.mubr.bf16.gmra.mrb[0].mxu0 %v843
    %v879 = vpop.f32.mrb[0].mxu0
    %v880 = vadd.f32 %v113, %v879
    %v881 = vpop.f32.mrb[0].mxu0
    %v882 = vpop.f32.mrb[0].mxu0
    %v883 = vpop.f32.mrb[0].mxu0
    %884 = vdwg.mxu0
    %v885 = vpack.c.bf16 %v720, %v720
    %886 = vmatprep.subr.bf16.mxu0 0
    %887 = vmatpush1.bf16.msra.mxu0 %v252
    %888 = vmatprep.subr.bf16.mxu0 0
    %889 = vmatpush1.bf16.msra.mxu0 %v253
    %890 = vmatprep.subr.bf16.mxu0 0
    %891 = vmatpush1.bf16.msra.mxu0 %v254
    %892 = vmatprep.subr.bf16.mxu0 0
    %893 = vmatpush1.bf16.msra.mxu0 %v255
    %894 = vmatprep.subr.bf16.mxu0 0
    %895 = vmatpush1.bf16.msra.mxu0 %v256
    %896 = vmatprep.subr.bf16.mxu0 0
    %897 = vmatpush1.bf16.msra.mxu0 %v257
    %898 = vmatprep.subr.bf16.mxu0 0
    %899 = vmatpush1.bf16.msra.mxu0 %v258
    %900 = vmatprep.subr.bf16.mxu0 0
    %901 = vmatpush1.bf16.msra.mxu0 %v259
    %902 = vmatprep.subr.bf16.mxu0 0
    %903 = vmatpush1.bf16.msra.mxu0 0
    %904 = vmatprep.subr.bf16.mxu0 0
    %905 = vmatpush1.bf16.msra.mxu0 0
    %906 = vmatprep.subr.bf16.mxu0 0
    %907 = vmatpush1.bf16.msra.mxu0 0
    %908 = vmatprep.subr.bf16.mxu0 0
    %909 = vmatpush1.bf16.msra.mxu0 0
    %910 = vmatprep.subr.bf16.mxu0 0
    %911 = vmatpush1.bf16.msra.mxu0 0
    %912 = vmatprep.subr.bf16.mxu0 0
    %913 = vmatpush1.bf16.msra.mxu0 0
    %914 = vmatprep.subr.bf16.mxu0 0
    %915 = vmatpush1.bf16.msra.mxu0 0
    %916 = vmatprep.subr.bf16.mxu0 0
    %917 = vmatpush1.bf16.msra.mxu0 0
    %918 = vmatprep.mubr.bf16.mxu0 0
    %919 = vmatmul.mubr.bf16.gmra.mrb[0].mxu0 %v885
    %v920 = vpop.f32.mrb[0].mxu0
    %v921 = vadd.f32 %v880, %v920
    %v922 = vpop.f32.mrb[0].mxu0
    %v923 = vpop.f32.mrb[0].mxu0
    %v924 = vpop.f32.mrb[0].mxu0
    %925 = vdwg.mxu0
    %v926 = vtanh.pop %v921
    %v928 = vcombine.high %v926, %v926
    %v930 = vunpack.c.l.s4 1966171168
    %v931 = vunpack.c.0.s8 %v930
    %v932 = vlaneseq
    %v933 = vshrl.u32 %v932, 7
    %v934 = vsub.s32 %v931, %v933
    %v935 = vrot.slane %v926, %v934
    %v937 = vunpack.c.l.s4 1966171168
    %v938 = vunpack.c.0.s8 %v937
    %v939 = vlaneseq
    %v940 = vshrl.u32 %v939, 7
    %v941 = vsub.s32 %v938, %v940
    %v942 = vrot.slane %v928, %v941
    %v943 = vcombine.high %v935, %v935
    %v944 = vcombine.high %v942, %v942
    %v946 = vunpack.c.l.s4 1966171168
    %v947 = vunpack.c.0.s8 %v946
    %v948 = vlaneseq
    %v949 = vshrl.u32 %v948, 7
    %v950 = vsub.s32 %v947, %v949
    %v951 = vrot.slane %v935, %v950
    %v953 = vunpack.c.l.s4 1966171168
    %v954 = vunpack.c.0.s8 %v953
    %v955 = vlaneseq
    %v956 = vshrl.u32 %v955, 7
    %v957 = vsub.s32 %v954, %v956
    %v958 = vrot.slane %v942, %v957
    %v960 = vunpack.c.l.s4 1966171168
    %v961 = vunpack.c.0.s8 %v960
    %v962 = vlaneseq
    %v963 = vshrl.u32 %v962, 7
    %v964 = vsub.s32 %v961, %v963
    %v965 = vrot.slane %v943, %v964
    %v967 = vunpack.c.l.s4 1966171168
    %v968 = vunpack.c.0.s8 %v967
    %v969 = vlaneseq
    %v970 = vshrl.u32 %v969, 7
    %v971 = vsub.s32 %v968, %v970
    %v972 = vrot.slane %v944, %v971
    %v973 = vcombine.high %v951, %v951
    %v974 = vcombine.high %v958, %v958
    %v975 = vcombine.high %v965, %v965
    %v976 = vcombine.high %v972, %v972
    %985 = vst [vmem:[#allocation11 + $0x3] sm:$0x1] %v951
    %986 = vst [vmem:[#allocation11 + $0xb] sm:$0x1] %v965
    %987 = vst [vmem:[#allocation11 + $0x13] sm:$0x1] %v973
    %988 = vst [vmem:[#allocation11 + $0x1b] sm:$0x1] %v975
    %989 = vst [vmem:[#allocation11 + $0x23] sm:$0x1] %v958
    %990 = vst [vmem:[#allocation11 + $0x2b] sm:$0x1] %v972
    %991 = vst [vmem:[#allocation11 + $0x33] sm:$0x1] %v974
    %992 = vst [vmem:[#allocation11 + $0x3b] sm:$0x1] %v976
    %v993 = vld [vmem:[#allocation3] sm:$0x4]
    %v994 = vld [vmem:[#allocation3 + $0x4] sm:$0x4]
    %v995 = vld [vmem:[#allocation3 + $0x8] sm:$0x4]
    %v996 = vld [vmem:[#allocation3 + $0xc] sm:$0x4]
    %v997 = vld [vmem:[#allocation3 + $0x10] sm:$0x4]
    %v998 = vld [vmem:[#allocation3 + $0x14] sm:$0x4]
    %v999 = vld [vmem:[#allocation3 + $0x18] sm:$0x4]
    %v1000 = vld [vmem:[#allocation3 + $0x1c] sm:$0x4]
    %v1009 = vunpack.c.l.b16 %v993
    %v1010 = vunpack.c.l.b16 %v994
    %v1011 = vunpack.c.l.b16 %v995
    %v1012 = vunpack.c.l.b16 %v996
    %v1013 = vunpack.c.l.b16 %v997
    %v1014 = vunpack.c.l.b16 %v998
    %v1015 = vunpack.c.l.b16 %v999
    %v1016 = vunpack.c.l.b16 %v1000
    %v1017 = vpack.c.b16 %v1009, %v1009
    %v1018 = vpack.c.b16 %v1010, %v1010
    %v1019 = vpack.c.b16 %v1011, %v1011
    %v1020 = vpack.c.b16 %v1012, %v1012
    %v1021 = vpack.c.b16 %v1013, %v1013
    %v1022 = vpack.c.b16 %v1014, %v1014
    %v1023 = vpack.c.b16 %v1015, %v1015
    %v1024 = vpack.c.b16 %v1016, %v1016
    %v1025 = vunpack.c.l.b16 %v1017
    %v1026 = vunpack.c.l.b16 %v1018
    %v1027 = vunpack.c.l.b16 %v1019
    %v1028 = vunpack.c.l.b16 %v1020
    %v1029 = vunpack.c.l.b16 %v1021
    %v1030 = vunpack.c.l.b16 %v1022
    %v1031 = vunpack.c.l.b16 %v1023
    %v1032 = vunpack.c.l.b16 %v1024
    %v1033 = vrot.slane %v1025, 4
    %v1034 = vrot.slane %v1026, 3
    %v1035 = vsel %vm148, %v1034, %v1033
    %v1036 = vrot.slane %v1027, 2
    %v1037 = vsel %vm151, %v1036, %v1035
    %v1038 = vrot.slane %v1028, 1
    %v1039 = vsel %vm154, %v1038, %v1037
    %v1040 = vsel %vm157, %v1029, %v1039
    %v1041 = vrot.slane %v1030, 7
    %v1042 = vsel %vm160, %v1041, %v1040
    %v1043 = vrot.slane %v1031, 6
    %v1044 = vsel %vm163, %v1043, %v1042
    %v1045 = vrot.slane %v1032, 5
    %v1046 = vsel %vm166, %v1045, %v1044
    %v1047 = vpack.c.b16 %v1046, %v1046
    %v1049 = vsel %vm175, %v1047, 0
    %1051 = vmatprep.subr.bf16.mxu0 0
    %1052 = vmatpush1.bf16.msra.mxu0 %v173
    %1053 = vmatprep.subr.bf16.mxu0 0
    %1054 = vmatpush1.bf16.msra.mxu0 0
    %1055 = vmatprep.subr.bf16.mxu0 0
    %1056 = vmatpush1.bf16.msra.mxu0 0
    %1057 = vmatprep.subr.bf16.mxu0 0
    %1058 = vmatpush1.bf16.msra.mxu0 0
    %1059 = vmatprep.subr.bf16.mxu0 0
    %1060 = vmatpush1.bf16.msra.mxu0 0
    %1061 = vmatprep.subr.bf16.mxu0 0
    %1062 = vmatpush1.bf16.msra.mxu0 0
    %1063 = vmatprep.subr.bf16.mxu0 0
    %1064 = vmatpush1.bf16.msra.mxu0 0
    %1065 = vmatprep.subr.bf16.mxu0 0
    %1066 = vmatpush1.bf16.msra.mxu0 0
    %1067 = vmatprep.subr.bf16.mxu0 0
    %1068 = vmatpush1.bf16.msra.mxu0 0
    %1069 = vmatprep.subr.bf16.mxu0 0
    %1070 = vmatpush1.bf16.msra.mxu0 0
    %1071 = vmatprep.subr.bf16.mxu0 0
    %1072 = vmatpush1.bf16.msra.mxu0 0
    %1073 = vmatprep.subr.bf16.mxu0 0
    %1074 = vmatpush1.bf16.msra.mxu0 0
    %1075 = vmatprep.subr.bf16.mxu0 0
    %1076 = vmatpush1.bf16.msra.mxu0 0
    %1077 = vmatprep.subr.bf16.mxu0 0
    %1078 = vmatpush1.bf16.msra.mxu0 0
    %1079 = vmatprep.subr.bf16.mxu0 0
    %1080 = vmatpush1.bf16.msra.mxu0 0
    %1081 = vmatprep.subr.bf16.mxu0 0
    %1082 = vmatpush1.bf16.msra.mxu0 0
    %1083 = vmatprep.mubr.bf16.mxu0 0
    %1084 = vmatmul.mubr.bf16.gmra.mrb[0].mxu0 %v1049
    %v1085 = vpop.f32.mrb[0].mxu0
    %v1086 = vadd.f32 %v113, %v1085
    %v1087 = vpop.f32.mrb[0].mxu0
    %v1088 = vpop.f32.mrb[0].mxu0
    %v1089 = vpop.f32.mrb[0].mxu0
    %1090 = vdwg.mxu0
    %v1091 = vpack.c.bf16 %v926, %v926
    %1092 = vmatprep.subr.bf16.mxu0 0
    %1093 = vmatpush1.bf16.msra.mxu0 %v252
    %1094 = vmatprep.subr.bf16.mxu0 0
    %1095 = vmatpush1.bf16.msra.mxu0 %v253
    %1096 = vmatprep.subr.bf16.mxu0 0
    %1097 = vmatpush1.bf16.msra.mxu0 %v254
    %1098 = vmatprep.subr.bf16.mxu0 0
    %1099 = vmatpush1.bf16.msra.mxu0 %v255
    %1100 = vmatprep.subr.bf16.mxu0 0
    %1101 = vmatpush1.bf16.msra.mxu0 %v256
    %1102 = vmatprep.subr.bf16.mxu0 0
    %1103 = vmatpush1.bf16.msra.mxu0 %v257
    %1104 = vmatprep.subr.bf16.mxu0 0
    %1105 = vmatpush1.bf16.msra.mxu0 %v258
    %1106 = vmatprep.subr.bf16.mxu0 0
    %1107 = vmatpush1.bf16.msra.mxu0 %v259
    %1108 = vmatprep.subr.bf16.mxu0 0
    %1109 = vmatpush1.bf16.msra.mxu0 0
    %1110 = vmatprep.subr.bf16.mxu0 0
    %1111 = vmatpush1.bf16.msra.mxu0 0
    %1112 = vmatprep.subr.bf16.mxu0 0
    %1113 = vmatpush1.bf16.msra.mxu0 0
    %1114 = vmatprep.subr.bf16.mxu0 0
    %1115 = vmatpush1.bf16.msra.mxu0 0
    %1116 = vmatprep.subr.bf16.mxu0 0
    %1117 = vmatpush1.bf16.msra.mxu0 0
    %1118 = vmatprep.subr.bf16.mxu0 0
    %1119 = vmatpush1.bf16.msra.mxu0 0
    %1120 = vmatprep.subr.bf16.mxu0 0
    %1121 = vmatpush1.bf16.msra.mxu0 0
    %1122 = vmatprep.subr.bf16.mxu0 0
    %1123 = vmatpush1.bf16.msra.mxu0 0
    %1124 = vmatprep.mubr.bf16.mxu0 0
    %1125 = vmatmul.mubr.bf16.gmra.mrb[0].mxu0 %v1091
    %v1126 = vpop.f32.mrb[0].mxu0
    %v1127 = vadd.f32 %v1086, %v1126
    %v1128 = vpop.f32.mrb[0].mxu0
    %v1129 = vpop.f32.mrb[0].mxu0
    %v1130 = vpop.f32.mrb[0].mxu0
    %1131 = vdwg.mxu0
    %v1132 = vtanh.pop %v1127
    %v1134 = vcombine.high %v1132, %v1132
    %v1136 = vunpack.c.l.s4 1966171168
    %v1137 = vunpack.c.0.s8 %v1136
    %v1138 = vlaneseq
    %v1139 = vshrl.u32 %v1138, 7
    %v1140 = vsub.s32 %v1137, %v1139
    %v1141 = vrot.slane %v1132, %v1140
    %v1143 = vunpack.c.l.s4 1966171168
    %v1144 = vunpack.c.0.s8 %v1143
    %v1145 = vlaneseq
    %v1146 = vshrl.u32 %v1145, 7
    %v1147 = vsub.s32 %v1144, %v1146
    %v1148 = vrot.slane %v1134, %v1147
    %v1149 = vcombine.high %v1141, %v1141
    %v1150 = vcombine.high %v1148, %v1148
    %v1152 = vunpack.c.l.s4 1966171168
    %v1153 = vunpack.c.0.s8 %v1152
    %v1154 = vlaneseq
    %v1155 = vshrl.u32 %v1154, 7
    %v1156 = vsub.s32 %v1153, %v1155
    %v1157 = vrot.slane %v1141, %v1156
    %v1159 = vunpack.c.l.s4 1966171168
    %v1160 = vunpack.c.0.s8 %v1159
    %v1161 = vlaneseq
    %v1162 = vshrl.u32 %v1161, 7
    %v1163 = vsub.s32 %v1160, %v1162
    %v1164 = vrot.slane %v1148, %v1163
    %v1166 = vunpack.c.l.s4 1966171168
    %v1167 = vunpack.c.0.s8 %v1166
    %v1168 = vlaneseq
    %v1169 = vshrl.u32 %v1168, 7
    %v1170 = vsub.s32 %v1167, %v1169
    %v1171 = vrot.slane %v1149, %v1170
    %v1173 = vunpack.c.l.s4 1966171168
    %v1174 = vunpack.c.0.s8 %v1173
    %v1175 = vlaneseq
    %v1176 = vshrl.u32 %v1175, 7
    %v1177 = vsub.s32 %v1174, %v1176
    %v1178 = vrot.slane %v1150, %v1177
    %v1179 = vcombine.high %v1157, %v1157
    %v1180 = vcombine.high %v1164, %v1164
    %v1181 = vcombine.high %v1171, %v1171
    %v1182 = vcombine.high %v1178, %v1178
    %1191 = vst [vmem:[#allocation11 + $0x4] sm:$0x1] %v1157
    %1192 = vst [vmem:[#allocation11 + $0xc] sm:$0x1] %v1171
    %1193 = vst [vmem:[#allocation11 + $0x14] sm:$0x1] %v1179
    %1194 = vst [vmem:[#allocation11 + $0x1c] sm:$0x1] %v1181
    %1195 = vst [vmem:[#allocation11 + $0x24] sm:$0x1] %v1164
    %1196 = vst [vmem:[#allocation11 + $0x2c] sm:$0x1] %v1178
    %1197 = vst [vmem:[#allocation11 + $0x34] sm:$0x1] %v1180
    %1198 = vst [vmem:[#allocation11 + $0x3c] sm:$0x1] %v1182
    %v1199 = vld [vmem:[#allocation3] sm:$0x4]
    %v1200 = vld [vmem:[#allocation3 + $0x4] sm:$0x4]
    %v1201 = vld [vmem:[#allocation3 + $0x8] sm:$0x4]
    %v1202 = vld [vmem:[#allocation3 + $0xc] sm:$0x4]
    %v1203 = vld [vmem:[#allocation3 + $0x10] sm:$0x4]
    %v1204 = vld [vmem:[#allocation3 + $0x14] sm:$0x4]
    %v1205 = vld [vmem:[#allocation3 + $0x18] sm:$0x4]
    %v1206 = vld [vmem:[#allocation3 + $0x1c] sm:$0x4]
    %v1215 = vunpack.c.l.b16 %v1199
    %v1216 = vunpack.c.l.b16 %v1200
    %v1217 = vunpack.c.l.b16 %v1201
    %v1218 = vunpack.c.l.b16 %v1202
    %v1219 = vunpack.c.l.b16 %v1203
    %v1220 = vunpack.c.l.b16 %v1204
    %v1221 = vunpack.c.l.b16 %v1205
    %v1222 = vunpack.c.l.b16 %v1206
    %v1223 = vpack.c.b16 %v1215, %v1215
    %v1224 = vpack.c.b16 %v1216, %v1216
    %v1225 = vpack.c.b16 %v1217, %v1217
    %v1226 = vpack.c.b16 %v1218, %v1218
    %v1227 = vpack.c.b16 %v1219, %v1219
    %v1228 = vpack.c.b16 %v1220, %v1220
    %v1229 = vpack.c.b16 %v1221, %v1221
    %v1230 = vpack.c.b16 %v1222, %v1222
    %v1231 = vunpack.c.l.b16 %v1223
    %v1232 = vunpack.c.l.b16 %v1224
    %v1233 = vunpack.c.l.b16 %v1225
    %v1234 = vunpack.c.l.b16 %v1226
    %v1235 = vunpack.c.l.b16 %v1227
    %v1236 = vunpack.c.l.b16 %v1228
    %v1237 = vunpack.c.l.b16 %v1229
    %v1238 = vunpack.c.l.b16 %v1230
    %v1239 = vrot.slane %v1231, 5
    %v1240 = vrot.slane %v1232, 4
    %v1241 = vsel %vm148, %v1240, %v1239
    %v1242 = vrot.slane %v1233, 3
    %v1243 = vsel %vm151, %v1242, %v1241
    %v1244 = vrot.slane %v1234, 2
    %v1245 = vsel %vm154, %v1244, %v1243
    %v1246 = vrot.slane %v1235, 1
    %v1247 = vsel %vm157, %v1246, %v1245
    %v1248 = vsel %vm160, %v1236, %v1247
    %v1249 = vrot.slane %v1237, 7
    %v1250 = vsel %vm163, %v1249, %v1248
    %v1251 = vrot.slane %v1238, 6
    %v1252 = vsel %vm166, %v1251, %v1250
    %v1253 = vpack.c.b16 %v1252, %v1252
    %v1255 = vsel %vm175, %v1253, 0
    %1257 = vmatprep.subr.bf16.mxu0 0
    %1258 = vmatpush1.bf16.msra.mxu0 %v173
    %1259 = vmatprep.subr.bf16.mxu0 0
    %1260 = vmatpush1.bf16.msra.mxu0 0
    %1261 = vmatprep.subr.bf16.mxu0 0
    %1262 = vmatpush1.bf16.msra.mxu0 0
    %1263 = vmatprep.subr.bf16.mxu0 0
    %1264 = vmatpush1.bf16.msra.mxu0 0
    %1265 = vmatprep.subr.bf16.mxu0 0
    %1266 = vmatpush1.bf16.msra.mxu0 0
    %1267 = vmatprep.subr.bf16.mxu0 0
    %1268 = vmatpush1.bf16.msra.mxu0 0
    %1269 = vmatprep.subr.bf16.mxu0 0
    %1270 = vmatpush1.bf16.msra.mxu0 0
    %1271 = vmatprep.subr.bf16.mxu0 0
    %1272 = vmatpush1.bf16.msra.mxu0 0
    %1273 = vmatprep.subr.bf16.mxu0 0
    %1274 = vmatpush1.bf16.msra.mxu0 0
    %1275 = vmatprep.subr.bf16.mxu0 0
    %1276 = vmatpush1.bf16.msra.mxu0 0
    %1277 = vmatprep.subr.bf16.mxu0 0
    %1278 = vmatpush1.bf16.msra.mxu0 0
    %1279 = vmatprep.subr.bf16.mxu0 0
    %1280 = vmatpush1.bf16.msra.mxu0 0
    %1281 = vmatprep.subr.bf16.mxu0 0
    %1282 = vmatpush1.bf16.msra.mxu0 0
    %1283 = vmatprep.subr.bf16.mxu0 0
    %1284 = vmatpush1.bf16.msra.mxu0 0
    %1285 = vmatprep.subr.bf16.mxu0 0
    %1286 = vmatpush1.bf16.msra.mxu0 0
    %1287 = vmatprep.subr.bf16.mxu0 0
    %1288 = vmatpush1.bf16.msra.mxu0 0
    %1289 = vmatprep.mubr.bf16.mxu0 0
    %1290 = vmatmul.mubr.bf16.gmra.mrb[0].mxu0 %v1255
    %v1291 = vpop.f32.mrb[0].mxu0
    %v1292 = vadd.f32 %v113, %v1291
    %v1293 = vpop.f32.mrb[0].mxu0
    %v1294 = vpop.f32.mrb[0].mxu0
    %v1295 = vpop.f32.mrb[0].mxu0
    %1296 = vdwg.mxu0
    %v1297 = vpack.c.bf16 %v1132, %v1132
    %1298 = vmatprep.subr.bf16.mxu0 0
    %1299 = vmatpush1.bf16.msra.mxu0 %v252
    %1300 = vmatprep.subr.bf16.mxu0 0
    %1301 = vmatpush1.bf16.msra.mxu0 %v253
    %1302 = vmatprep.subr.bf16.mxu0 0
    %1303 = vmatpush1.bf16.msra.mxu0 %v254
    %1304 = vmatprep.subr.bf16.mxu0 0
    %1305 = vmatpush1.bf16.msra.mxu0 %v255
    %1306 = vmatprep.subr.bf16.mxu0 0
    %1307 = vmatpush1.bf16.msra.mxu0 %v256
    %1308 = vmatprep.subr.bf16.mxu0 0
    %1309 = vmatpush1.bf16.msra.mxu0 %v257
    %1310 = vmatprep.subr.bf16.mxu0 0
    %1311 = vmatpush1.bf16.msra.mxu0 %v258
    %1312 = vmatprep.subr.bf16.mxu0 0
    %1313 = vmatpush1.bf16.msra.mxu0 %v259
    %1314 = vmatprep.subr.bf16.mxu0 0
    %1315 = vmatpush1.bf16.msra.mxu0 0
    %1316 = vmatprep.subr.bf16.mxu0 0
    %1317 = vmatpush1.bf16.msra.mxu0 0
    %1318 = vmatprep.subr.bf16.mxu0 0
    %1319 = vmatpush1.bf16.msra.mxu0 0
    %1320 = vmatprep.subr.bf16.mxu0 0
    %1321 = vmatpush1.bf16.msra.mxu0 0
    %1322 = vmatprep.subr.bf16.mxu0 0
    %1323 = vmatpush1.bf16.msra.mxu0 0
    %1324 = vmatprep.subr.bf16.mxu0 0
    %1325 = vmatpush1.bf16.msra.mxu0 0
    %1326 = vmatprep.subr.bf16.mxu0 0
    %1327 = vmatpush1.bf16.msra.mxu0 0
    %1328 = vmatprep.subr.bf16.mxu0 0
    %1329 = vmatpush1.bf16.msra.mxu0 0
    %1330 = vmatprep.mubr.bf16.mxu0 0
    %1331 = vmatmul.mubr.bf16.gmra.mrb[0].mxu0 %v1297
    %v1332 = vpop.f32.mrb[0].mxu0
    %v1333 = vadd.f32 %v1292, %v1332
    %v1334 = vpop.f32.mrb[0].mxu0
    %v1335 = vpop.f32.mrb[0].mxu0
    %v1336 = vpop.f32.mrb[0].mxu0
    %1337 = vdwg.mxu0
    %v1338 = vtanh.pop %v1333
    %v1340 = vcombine.high %v1338, %v1338
    %v1342 = vunpack.c.l.s4 1966171168
    %v1343 = vunpack.c.0.s8 %v1342
    %v1344 = vlaneseq
    %v1345 = vshrl.u32 %v1344, 7
    %v1346 = vsub.s32 %v1343, %v1345
    %v1347 = vrot.slane %v1338, %v1346
    %v1349 = vunpack.c.l.s4 1966171168
    %v1350 = vunpack.c.0.s8 %v1349
    %v1351 = vlaneseq
    %v1352 = vshrl.u32 %v1351, 7
    %v1353 = vsub.s32 %v1350, %v1352
    %v1354 = vrot.slane %v1340, %v1353
    %v1355 = vcombine.high %v1347, %v1347
    %v1356 = vcombine.high %v1354, %v1354
    %v1358 = vunpack.c.l.s4 1966171168
    %v1359 = vunpack.c.0.s8 %v1358
    %v1360 = vlaneseq
    %v1361 = vshrl.u32 %v1360, 7
    %v1362 = vsub.s32 %v1359, %v1361
    %v1363 = vrot.slane %v1347, %v1362
    %v1365 = vunpack.c.l.s4 1966171168
    %v1366 = vunpack.c.0.s8 %v1365
    %v1367 = vlaneseq
    %v1368 = vshrl.u32 %v1367, 7
    %v1369 = vsub.s32 %v1366, %v1368
    %v1370 = vrot.slane %v1354, %v1369
    %v1372 = vunpack.c.l.s4 1966171168
    %v1373 = vunpack.c.0.s8 %v1372
    %v1374 = vlaneseq
    %v1375 = vshrl.u32 %v1374, 7
    %v1376 = vsub.s32 %v1373, %v1375
    %v1377 = vrot.slane %v1355, %v1376
    %v1379 = vunpack.c.l.s4 1966171168
    %v1380 = vunpack.c.0.s8 %v1379
    %v1381 = vlaneseq
    %v1382 = vshrl.u32 %v1381, 7
    %v1383 = vsub.s32 %v1380, %v1382
    %v1384 = vrot.slane %v1356, %v1383
    %v1385 = vcombine.high %v1363, %v1363
    %v1386 = vcombine.high %v1370, %v1370
    %v1387 = vcombine.high %v1377, %v1377
    %v1388 = vcombine.high %v1384, %v1384
    %1397 = vst [vmem:[#allocation11 + $0x5] sm:$0x1] %v1363
    %1398 = vst [vmem:[#allocation11 + $0xd] sm:$0x1] %v1377
    %1399 = vst [vmem:[#allocation11 + $0x15] sm:$0x1] %v1385
    %1400 = vst [vmem:[#allocation11 + $0x1d] sm:$0x1] %v1387
    %1401 = vst [vmem:[#allocation11 + $0x25] sm:$0x1] %v1370
    %1402 = vst [vmem:[#allocation11 + $0x2d] sm:$0x1] %v1384
    %1403 = vst [vmem:[#allocation11 + $0x35] sm:$0x1] %v1386
    %1404 = vst [vmem:[#allocation11 + $0x3d] sm:$0x1] %v1388
    %v1405 = vld [vmem:[#allocation3] sm:$0x8]
    %v1406 = vld [vmem:[#allocation3 + $0x4] sm:$0x8]
    %v1407 = vld [vmem:[#allocation3 + $0x8] sm:$0x8]
    %v1408 = vld [vmem:[#allocation3 + $0xc] sm:$0x8]
    %v1409 = vld [vmem:[#allocation3 + $0x10] sm:$0x8]
    %v1410 = vld [vmem:[#allocation3 + $0x14] sm:$0x8]
    %v1411 = vld [vmem:[#allocation3 + $0x18] sm:$0x8]
    %v1412 = vld [vmem:[#allocation3 + $0x1c] sm:$0x8]
    %v1421 = vunpack.c.l.b16 %v1405
    %v1422 = vunpack.c.l.b16 %v1406
    %v1423 = vunpack.c.l.b16 %v1407
    %v1424 = vunpack.c.l.b16 %v1408
    %v1425 = vunpack.c.l.b16 %v1409
    %v1426 = vunpack.c.l.b16 %v1410
    %v1427 = vunpack.c.l.b16 %v1411
    %v1428 = vunpack.c.l.b16 %v1412
    %v1429 = vpack.c.b16 %v1421, %v1421
    %v1430 = vpack.c.b16 %v1422, %v1422
    %v1431 = vpack.c.b16 %v1423, %v1423
    %v1432 = vpack.c.b16 %v1424, %v1424
    %v1433 = vpack.c.b16 %v1425, %v1425
    %v1434 = vpack.c.b16 %v1426, %v1426
    %v1435 = vpack.c.b16 %v1427, %v1427
    %v1436 = vpack.c.b16 %v1428, %v1428
    %v1437 = vunpack.c.l.b16 %v1429
    %v1438 = vunpack.c.l.b16 %v1430
    %v1439 = vunpack.c.l.b16 %v1431
    %v1440 = vunpack.c.l.b16 %v1432
    %v1441 = vunpack.c.l.b16 %v1433
    %v1442 = vunpack.c.l.b16 %v1434
    %v1443 = vunpack.c.l.b16 %v1435
    %v1444 = vunpack.c.l.b16 %v1436
    %v1445 = vrot.slane %v1437, 6
    %v1446 = vrot.slane %v1438, 5
    %v1447 = vsel %vm148, %v1446, %v1445
    %v1448 = vrot.slane %v1439, 4
    %v1449 = vsel %vm151, %v1448, %v1447
    %v1450 = vrot.slane %v1440, 3
    %v1451 = vsel %vm154, %v1450, %v1449
    %v1452 = vrot.slane %v1441, 2
    %v1453 = vsel %vm157, %v1452, %v1451
    %v1454 = vrot.slane %v1442, 1
    %v1455 = vsel %vm160, %v1454, %v1453
    %v1456 = vsel %vm163, %v1443, %v1455
    %v1457 = vrot.slane %v1444, 7
    %v1458 = vsel %vm166, %v1457, %v1456
    %v1459 = vpack.c.b16 %v1458, %v1458
    %v1461 = vsel %vm175, %v1459, 0
    %1463 = vmatprep.subr.bf16.mxu0 0
    %1464 = vmatpush1.bf16.msra.mxu0 %v173
    %1465 = vmatprep.subr.bf16.mxu0 0
    %1466 = vmatpush1.bf16.msra.mxu0 0
    %1467 = vmatprep.subr.bf16.mxu0 0
    %1468 = vmatpush1.bf16.msra.mxu0 0
    %1469 = vmatprep.subr.bf16.mxu0 0
    %1470 = vmatpush1.bf16.msra.mxu0 0
    %1471 = vmatprep.subr.bf16.mxu0 0
    %1472 = vmatpush1.bf16.msra.mxu0 0
    %1473 = vmatprep.subr.bf16.mxu0 0
    %1474 = vmatpush1.bf16.msra.mxu0 0
    %1475 = vmatprep.subr.bf16.mxu0 0
    %1476 = vmatpush1.bf16.msra.mxu0 0
    %1477 = vmatprep.subr.bf16.mxu0 0
    %1478 = vmatpush1.bf16.msra.mxu0 0
    %1479 = vmatprep.subr.bf16.mxu0 0
    %1480 = vmatpush1.bf16.msra.mxu0 0
    %1481 = vmatprep.subr.bf16.mxu0 0
    %1482 = vmatpush1.bf16.msra.mxu0 0
    %1483 = vmatprep.subr.bf16.mxu0 0
    %1484 = vmatpush1.bf16.msra.mxu0 0
    %1485 = vmatprep.subr.bf16.mxu0 0
    %1486 = vmatpush1.bf16.msra.mxu0 0
    %1487 = vmatprep.subr.bf16.mxu0 0
    %1488 = vmatpush1.bf16.msra.mxu0 0
    %1489 = vmatprep.subr.bf16.mxu0 0
    %1490 = vmatpush1.bf16.msra.mxu0 0
    %1491 = vmatprep.subr.bf16.mxu0 0
    %1492 = vmatpush1.bf16.msra.mxu0 0
    %1493 = vmatprep.subr.bf16.mxu0 0
    %1494 = vmatpush1.bf16.msra.mxu0 0
    %1495 = vmatprep.mubr.bf16.mxu0 0
    %1496 = vmatmul.mubr.bf16.gmra.mrb[0].mxu0 %v1461
    %v1497 = vpop.f32.mrb[0].mxu0
    %v1498 = vadd.f32 %v113, %v1497
    %v1499 = vpop.f32.mrb[0].mxu0
    %v1500 = vpop.f32.mrb[0].mxu0
    %v1501 = vpop.f32.mrb[0].mxu0
    %1502 = vdwg.mxu0
    %v1503 = vpack.c.bf16 %v1338, %v1338
    %1504 = vmatprep.subr.bf16.mxu0 0
    %1505 = vmatpush1.bf16.msra.mxu0 %v252
    %1506 = vmatprep.subr.bf16.mxu0 0
    %1507 = vmatpush1.bf16.msra.mxu0 %v253
    %1508 = vmatprep.subr.bf16.mxu0 0
    %1509 = vmatpush1.bf16.msra.mxu0 %v254
    %1510 = vmatprep.subr.bf16.mxu0 0
    %1511 = vmatpush1.bf16.msra.mxu0 %v255
    %1512 = vmatprep.subr.bf16.mxu0 0
    %1513 = vmatpush1.bf16.msra.mxu0 %v256
    %1514 = vmatprep.subr.bf16.mxu0 0
    %1515 = vmatpush1.bf16.msra.mxu0 %v257
    %1516 = vmatprep.subr.bf16.mxu0 0
    %1517 = vmatpush1.bf16.msra.mxu0 %v258
    %1518 = vmatprep.subr.bf16.mxu0 0
    %1519 = vmatpush1.bf16.msra.mxu0 %v259
    %1520 = vmatprep.subr.bf16.mxu0 0
    %1521 = vmatpush1.bf16.msra.mxu0 0
    %1522 = vmatprep.subr.bf16.mxu0 0
    %1523 = vmatpush1.bf16.msra.mxu0 0
    %1524 = vmatprep.subr.bf16.mxu0 0
    %1525 = vmatpush1.bf16.msra.mxu0 0
    %1526 = vmatprep.subr.bf16.mxu0 0
    %1527 = vmatpush1.bf16.msra.mxu0 0
    %1528 = vmatprep.subr.bf16.mxu0 0
    %1529 = vmatpush1.bf16.msra.mxu0 0
    %1530 = vmatprep.subr.bf16.mxu0 0
    %1531 = vmatpush1.bf16.msra.mxu0 0
    %1532 = vmatprep.subr.bf16.mxu0 0
    %1533 = vmatpush1.bf16.msra.mxu0 0
    %1534 = vmatprep.subr.bf16.mxu0 0
    %1535 = vmatpush1.bf16.msra.mxu0 0
    %1536 = vmatprep.mubr.bf16.mxu0 0
    %1537 = vmatmul.mubr.bf16.gmra.mrb[0].mxu0 %v1503
    %v1538 = vpop.f32.mrb[0].mxu0
    %v1539 = vadd.f32 %v1498, %v1538
    %v1540 = vpop.f32.mrb[0].mxu0
    %v1541 = vpop.f32.mrb[0].mxu0
    %v1542 = vpop.f32.mrb[0].mxu0
    %1543 = vdwg.mxu0
    %v1544 = vtanh.pop %v1539
    %v1546 = vcombine.high %v1544, %v1544
    %v1548 = vunpack.c.l.s4 1966171168
    %v1549 = vunpack.c.0.s8 %v1548
    %v1550 = vlaneseq
    %v1551 = vshrl.u32 %v1550, 7
    %v1552 = vsub.s32 %v1549, %v1551
    %v1553 = vrot.slane %v1544, %v1552
    %v1555 = vunpack.c.l.s4 1966171168
    %v1556 = vunpack.c.0.s8 %v1555
    %v1557 = vlaneseq
    %v1558 = vshrl.u32 %v1557, 7
    %v1559 = vsub.s32 %v1556, %v1558
    %v1560 = vrot.slane %v1546, %v1559
    %v1561 = vcombine.high %v1553, %v1553
    %v1562 = vcombine.high %v1560, %v1560
    %v1564 = vunpack.c.l.s4 1966171168
    %v1565 = vunpack.c.0.s8 %v1564
    %v1566 = vlaneseq
    %v1567 = vshrl.u32 %v1566, 7
    %v1568 = vsub.s32 %v1565, %v1567
    %v1569 = vrot.slane %v1553, %v1568
    %v1571 = vunpack.c.l.s4 1966171168
    %v1572 = vunpack.c.0.s8 %v1571
    %v1573 = vlaneseq
    %v1574 = vshrl.u32 %v1573, 7
    %v1575 = vsub.s32 %v1572, %v1574
    %v1576 = vrot.slane %v1560, %v1575
    %v1578 = vunpack.c.l.s4 1966171168
    %v1579 = vunpack.c.0.s8 %v1578
    %v1580 = vlaneseq
    %v1581 = vshrl.u32 %v1580, 7
    %v1582 = vsub.s32 %v1579, %v1581
    %v1583 = vrot.slane %v1561, %v1582
    %v1585 = vunpack.c.l.s4 1966171168
    %v1586 = vunpack.c.0.s8 %v1585
    %v1587 = vlaneseq
    %v1588 = vshrl.u32 %v1587, 7
    %v1589 = vsub.s32 %v1586, %v1588
    %v1590 = vrot.slane %v1562, %v1589
    %v1591 = vcombine.high %v1569, %v1569
    %v1592 = vcombine.high %v1576, %v1576
    %v1593 = vcombine.high %v1583, %v1583
    %v1594 = vcombine.high %v1590, %v1590
    %1603 = vst [vmem:[#allocation11 + $0x6] sm:$0x1] %v1569
    %1604 = vst [vmem:[#allocation11 + $0xe] sm:$0x1] %v1583
    %1605 = vst [vmem:[#allocation11 + $0x16] sm:$0x1] %v1591
    %1606 = vst [vmem:[#allocation11 + $0x1e] sm:$0x1] %v1593
    %1607 = vst [vmem:[#allocation11 + $0x26] sm:$0x1] %v1576
    %1608 = vst [vmem:[#allocation11 + $0x2e] sm:$0x1] %v1590
    %1609 = vst [vmem:[#allocation11 + $0x36] sm:$0x1] %v1592
    %1610 = vst [vmem:[#allocation11 + $0x3e] sm:$0x1] %v1594
    %v1611 = vld [vmem:[#allocation3] sm:$0x8]
    %v1612 = vld [vmem:[#allocation3 + $0x4] sm:$0x8]
    %v1613 = vld [vmem:[#allocation3 + $0x8] sm:$0x8]
    %v1614 = vld [vmem:[#allocation3 + $0xc] sm:$0x8]
    %v1615 = vld [vmem:[#allocation3 + $0x10] sm:$0x8]
    %v1616 = vld [vmem:[#allocation3 + $0x14] sm:$0x8]
    %v1617 = vld [vmem:[#allocation3 + $0x18] sm:$0x8]
    %v1618 = vld [vmem:[#allocation3 + $0x1c] sm:$0x8]
    %v1627 = vunpack.c.l.b16 %v1611
    %v1628 = vunpack.c.l.b16 %v1612
    %v1629 = vunpack.c.l.b16 %v1613
    %v1630 = vunpack.c.l.b16 %v1614
    %v1631 = vunpack.c.l.b16 %v1615
    %v1632 = vunpack.c.l.b16 %v1616
    %v1633 = vunpack.c.l.b16 %v1617
    %v1634 = vunpack.c.l.b16 %v1618
    %v1635 = vpack.c.b16 %v1627, %v1627
    %v1636 = vpack.c.b16 %v1628, %v1628
    %v1637 = vpack.c.b16 %v1629, %v1629
    %v1638 = vpack.c.b16 %v1630, %v1630
    %v1639 = vpack.c.b16 %v1631, %v1631
    %v1640 = vpack.c.b16 %v1632, %v1632
    %v1641 = vpack.c.b16 %v1633, %v1633
    %v1642 = vpack.c.b16 %v1634, %v1634
    %v1643 = vunpack.c.l.b16 %v1635
    %v1644 = vunpack.c.l.b16 %v1636
    %v1645 = vunpack.c.l.b16 %v1637
    %v1646 = vunpack.c.l.b16 %v1638
    %v1647 = vunpack.c.l.b16 %v1639
    %v1648 = vunpack.c.l.b16 %v1640
    %v1649 = vunpack.c.l.b16 %v1641
    %v1650 = vunpack.c.l.b16 %v1642
    %v1651 = vrot.slane %v1643, 7
    %v1652 = vrot.slane %v1644, 6
    %v1653 = vsel %vm148, %v1652, %v1651
    %v1654 = vrot.slane %v1645, 5
    %v1655 = vsel %vm151, %v1654, %v1653
    %v1656 = vrot.slane %v1646, 4
    %v1657 = vsel %vm154, %v1656, %v1655
    %v1658 = vrot.slane %v1647, 3
    %v1659 = vsel %vm157, %v1658, %v1657
    %v1660 = vrot.slane %v1648, 2
    %v1661 = vsel %vm160, %v1660, %v1659
    %v1662 = vrot.slane %v1649, 1
    %v1663 = vsel %vm163, %v1662, %v1661
    %v1664 = vsel %vm166, %v1650, %v1663
    %v1665 = vpack.c.b16 %v1664, %v1664
    %v1667 = vsel %vm175, %v1665, 0
    %1669 = vmatprep.subr.bf16.mxu0 0
    %1670 = vmatpush1.bf16.msra.mxu0 %v173
    %1671 = vmatprep.subr.bf16.mxu0 0
    %1672 = vmatpush1.bf16.msra.mxu0 0
    %1673 = vmatprep.subr.bf16.mxu0 0
    %1674 = vmatpush1.bf16.msra.mxu0 0
    %1675 = vmatprep.subr.bf16.mxu0 0
    %1676 = vmatpush1.bf16.msra.mxu0 0
    %1677 = vmatprep.subr.bf16.mxu0 0
    %1678 = vmatpush1.bf16.msra.mxu0 0
    %1679 = vmatprep.subr.bf16.mxu0 0
    %1680 = vmatpush1.bf16.msra.mxu0 0
    %1681 = vmatprep.subr.bf16.mxu0 0
    %1682 = vmatpush1.bf16.msra.mxu0 0
    %1683 = vmatprep.subr.bf16.mxu0 0
    %1684 = vmatpush1.bf16.msra.mxu0 0
    %1685 = vmatprep.subr.bf16.mxu0 0
    %1686 = vmatpush1.bf16.msra.mxu0 0
    %1687 = vmatprep.subr.bf16.mxu0 0
    %1688 = vmatpush1.bf16.msra.mxu0 0
    %1689 = vmatprep.subr.bf16.mxu0 0
    %1690 = vmatpush1.bf16.msra.mxu0 0
    %1691 = vmatprep.subr.bf16.mxu0 0
    %1692 = vmatpush1.bf16.msra.mxu0 0
    %1693 = vmatprep.subr.bf16.mxu0 0
    %1694 = vmatpush1.bf16.msra.mxu0 0
    %1695 = vmatprep.subr.bf16.mxu0 0
    %1696 = vmatpush1.bf16.msra.mxu0 0
    %1697 = vmatprep.subr.bf16.mxu0 0
    %1698 = vmatpush1.bf16.msra.mxu0 0
    %1699 = vmatprep.subr.bf16.mxu0 0
    %1700 = vmatpush1.bf16.msra.mxu0 0
    %1701 = vmatprep.mubr.bf16.mxu0 0
    %1702 = vmatmul.mubr.bf16.gmra.mrb[0].mxu0 %v1667
    %v1703 = vpop.f32.mrb[0].mxu0
    %v1704 = vadd.f32 %v113, %v1703
    %v1705 = vpop.f32.mrb[0].mxu0
    %v1706 = vpop.f32.mrb[0].mxu0
    %v1707 = vpop.f32.mrb[0].mxu0
    %1708 = vdwg.mxu0
    %v1709 = vpack.c.bf16 %v1544, %v1544
    %1710 = vmatprep.subr.bf16.mxu0 0
    %1711 = vmatpush1.bf16.msra.mxu0 %v252
    %1712 = vmatprep.subr.bf16.mxu0 0
    %1713 = vmatpush1.bf16.msra.mxu0 %v253
    %1714 = vmatprep.subr.bf16.mxu0 0
    %1715 = vmatpush1.bf16.msra.mxu0 %v254
    %1716 = vmatprep.subr.bf16.mxu0 0
    %1717 = vmatpush1.bf16.msra.mxu0 %v255
    %1718 = vmatprep.subr.bf16.mxu0 0
    %1719 = vmatpush1.bf16.msra.mxu0 %v256
    %1720 = vmatprep.subr.bf16.mxu0 0
    %1721 = vmatpush1.bf16.msra.mxu0 %v257
    %1722 = vmatprep.subr.bf16.mxu0 0
    %1723 = vmatpush1.bf16.msra.mxu0 %v258
    %1724 = vmatprep.subr.bf16.mxu0 0
    %1725 = vmatpush1.bf16.msra.mxu0 %v259
    %1726 = vmatprep.subr.bf16.mxu0 0
    %1727 = vmatpush1.bf16.msra.mxu0 0
    %1728 = vmatprep.subr.bf16.mxu0 0
    %1729 = vmatpush1.bf16.msra.mxu0 0
    %1730 = vmatprep.subr.bf16.mxu0 0
    %1731 = vmatpush1.bf16.msra.mxu0 0
    %1732 = vmatprep.subr.bf16.mxu0 0
    %1733 = vmatpush1.bf16.msra.mxu0 0
    %1734 = vmatprep.subr.bf16.mxu0 0
    %1735 = vmatpush1.bf16.msra.mxu0 0
    %1736 = vmatprep.subr.bf16.mxu0 0
    %1737 = vmatpush1.bf16.msra.mxu0 0
    %1738 = vmatprep.subr.bf16.mxu0 0
    %1739 = vmatpush1.bf16.msra.mxu0 0
    %1740 = vmatprep.subr.bf16.mxu0 0
    %1741 = vmatpush1.bf16.msra.mxu0 0
    %1742 = vmatprep.mubr.bf16.mxu0 0
    %1743 = vmatmul.mubr.bf16.gmra.mrb[0].mxu0 %v1709
    %v1744 = vpop.f32.mrb[0].mxu0
    %v1745 = vadd.f32 %v1704, %v1744
    %v1746 = vpop.f32.mrb[0].mxu0
    %v1747 = vpop.f32.mrb[0].mxu0
    %v1748 = vpop.f32.mrb[0].mxu0
    %1749 = vdwg.mxu0
    %v1750 = vtanh.pop %v1745
    %v1752 = vcombine.high %v1750, %v1750
    %v1754 = vunpack.c.l.s4 1966171168
    %v1755 = vunpack.c.0.s8 %v1754
    %v1756 = vlaneseq
    %v1757 = vshrl.u32 %v1756, 7
    %v1758 = vsub.s32 %v1755, %v1757
    %v1759 = vrot.slane %v1750, %v1758
    %v1761 = vunpack.c.l.s4 1966171168
    %v1762 = vunpack.c.0.s8 %v1761
    %v1763 = vlaneseq
    %v1764 = vshrl.u32 %v1763, 7
    %v1765 = vsub.s32 %v1762, %v1764
    %v1766 = vrot.slane %v1752, %v1765
    %v1767 = vcombine.high %v1759, %v1759
    %v1768 = vcombine.high %v1766, %v1766
    %v1770 = vunpack.c.l.s4 1966171168
    %v1771 = vunpack.c.0.s8 %v1770
    %v1772 = vlaneseq
    %v1773 = vshrl.u32 %v1772, 7
    %v1774 = vsub.s32 %v1771, %v1773
    %v1775 = vrot.slane %v1759, %v1774
    %v1777 = vunpack.c.l.s4 1966171168
    %v1778 = vunpack.c.0.s8 %v1777
    %v1779 = vlaneseq
    %v1780 = vshrl.u32 %v1779, 7
    %v1781 = vsub.s32 %v1778, %v1780
    %v1782 = vrot.slane %v1766, %v1781
    %v1784 = vunpack.c.l.s4 1966171168
    %v1785 = vunpack.c.0.s8 %v1784
    %v1786 = vlaneseq
    %v1787 = vshrl.u32 %v1786, 7
    %v1788 = vsub.s32 %v1785, %v1787
    %v1789 = vrot.slane %v1767, %v1788
    %v1791 = vunpack.c.l.s4 1966171168
    %v1792 = vunpack.c.0.s8 %v1791
    %v1793 = vlaneseq
    %v1794 = vshrl.u32 %v1793, 7
    %v1795 = vsub.s32 %v1792, %v1794
    %v1796 = vrot.slane %v1768, %v1795
    %v1797 = vcombine.high %v1775, %v1775
    %v1798 = vcombine.high %v1782, %v1782
    %v1799 = vcombine.high %v1789, %v1789
    %v1800 = vcombine.high %v1796, %v1796
    %1809 = vst [vmem:[#allocation11 + $0x7] sm:$0x1] %v1775
    %1810 = vst [vmem:[#allocation11 + $0xf] sm:$0x1] %v1789
    %1811 = vst [vmem:[#allocation11 + $0x17] sm:$0x1] %v1797
    %1812 = vst [vmem:[#allocation11 + $0x1f] sm:$0x1] %v1799
    %1813 = vst [vmem:[#allocation11 + $0x27] sm:$0x1] %v1782
    %1814 = vst [vmem:[#allocation11 + $0x2f] sm:$0x1] %v1796
    %1815 = vst [vmem:[#allocation11 + $0x37] sm:$0x1] %v1798
    %1816 = vst [vmem:[#allocation11 + $0x3f] sm:$0x1] %v1800
    %1817 = vst [vmem:[#allocation2] sm:$0xff] %v1750
    // Predicated region
    $region42: #{tpu_custom_call.1} parent=1 // pred_check
      _
    $region43: #{tpu_custom_call.1} parent=1 // pred_check_branch
      %1819 = sbr.rel (0) target = $region45
    $region44: #{tpu_custom_call.1} parent=1 // pred_region
      %s1821 = ssub.s32 1024, 1024
      %1822 = vsyncadd [#allocation5], %s1821
      %s1823 = sshll.u32 [#allocation11], 4
      %s1824 = int_to_ptr.vmem [resolvable:$true] %s1823
      %1829 = dma.vmem_to_hbm [thread:$0]  %s1824, 1024, %s5, [#allocation5], 128, 128, 8
    $region45: #{tpu_custom_call.1} parent=1 // pred_fallthru
      _
    // Predicated region
    $region46: #{tpu_custom_call.1} parent=1 // pred_check
      _
    $region47: #{tpu_custom_call.1} parent=1 // pred_check_branch
      %1831 = sbr.rel (0) target = $region49
    $region48: #{tpu_custom_call.1} parent=1 // pred_region
      %1832 = dma.done [#allocation5], 1024
    $region49: #{tpu_custom_call.1} parent=1 // pred_fallthru
      _
    %1833 = vsyncpa [#allocation4], 1
    %1834 = vsyncpa [#allocation7], 1
    %1835 = vsyncpa [#allocation10], 1
    %1836 = vsyncpa [#allocation5], 1

</llo_original>
